<compile_context>
chip_gen: v7x
topology: tpu7x:2x2x1
jax: 0.10.0
libtpu: 0.0.40
codegen_flags: <defaults>
</compile_context>

<pallas_src>
import functools

import jax
import jax.numpy as jnp
from jax.experimental import pallas as pl
from jax.experimental.pallas import tpu as pltpu

_COMPUTE = jnp.bfloat16  # MXU-operand / activation storage dtype
_MIB = 1024 * 1024


# ---------------------------------------------------------------------------
# Helpers
# ---------------------------------------------------------------------------
def _row_tile(n):
    """Largest MXU-friendly row tile that divides n (<=512 rows).

    Keeps >=2 grid steps (v7x megacore) unless that would shrink the tile
    below 512 rows when the full array already fits a single 512-row tile.
    """
    for t in (512, 256, 128, 64, 32, 16):
        if n % t == 0 and (n // t >= 2 or t == 512):
            return t
    return n


def _vmem_limit(nbytes):
    """Explicit scoped-VMEM budget: >= 32 MiB default, capped at 64 MiB so it
    stays valid on v7x (64 MiB physical VMEM per TensorCore)."""
    return int(min(max(int(nbytes), 32 * _MIB), 64 * _MIB))


def _cost(flops, transcendentals, arrays, out_bytes):
    nbytes = int(out_bytes)
    for a in arrays:
        nbytes += int(a.size) * jnp.dtype(a.dtype).itemsize
    return pl.CostEstimate(flops=int(flops),
                           transcendentals=int(transcendentals),
                           bytes_accessed=nbytes)


# ---------------------------------------------------------------------------
# Pallas kernels
# ---------------------------------------------------------------------------
def _conv_dual_silu_kernel(x_ref, w_ref, b_ref, o1_ref, o2_ref, *, split):
    # Top-level cv1/cv2: one fused weight [W1 | W2] -> one MXU pass, two outputs.
    y = jnp.dot(x_ref[...], w_ref[...], preferred_element_type=jnp.float32)
    y = y + b_ref[...]
    y = y * jax.nn.sigmoid(y)                               # SiLU (f32)
    o1_ref[...] = y[:, :split].astype(o1_ref.dtype)
    o2_ref[...] = y[:, split:].astype(o2_ref.dtype)


def _bottleneck_kernel(x_ref, posb_ref, wcv1_ref, bcv1_ref, wke_ref, bke_ref,
                       wqp_ref, wv_ref, bv_ref, wcv2_ref, bcv2_ref, o_ref):
    """Fully fused ExtraPositionPromptSABottleneck for one batch element."""
    f32 = jnp.float32
    x = x_ref[0]                                            # (HW, nd) bf16
    # cv1: 1x1 Conv + BN(eval, folded) + SiLU
    x1 = jnp.dot(x, wcv1_ref[...], preferred_element_type=f32) + bcv1_ref[...]
    x1 = (x1 * jax.nn.sigmoid(x1)).astype(x.dtype)          # (HW, C) bf16
    # Fused projections (no channel slicing): rhs = [k | e], lhs = [q | pos].
    ke = jnp.dot(x1, wke_ref[...], preferred_element_type=f32) + bke_ref[...]
    qp = jnp.dot(x1, wqp_ref[...], preferred_element_type=f32) + posb_ref[...]
    # energy[i, j] = q_i . k_j + pos_i . e_j  -- single MXU contraction.
    dn = (((1,), (1,)), ((), ()))                           # A @ B^T (contract C)
    energy = jax.lax.dot_general(qp.astype(x.dtype), ke.astype(x.dtype), dn,
                                 preferred_element_type=f32)  # (HW, HW) f32
    energy = energy - jnp.max(energy, axis=-1, keepdims=True)
    p = jnp.exp(energy)                                     # unnormalized attn
    denom = jnp.sum(p, axis=-1, keepdims=True)              # (HW, 1)
    v = jnp.dot(x1, wv_ref[...], preferred_element_type=f32)
    v = (v + bv_ref[...]).astype(x.dtype)                   # (HW, C) bf16
    out = jnp.dot(p.astype(x.dtype), v, preferred_element_type=f32)
    # Deferred softmax normalization: O(HW*C) multiply, exact (HW,1) reciprocal.
    out = out * pl.reciprocal(denom)
    # cv2 (Conv + BN + SiLU) fused with the shortcut add.
    y = jnp.dot(out.astype(x.dtype), wcv2_ref[...], preferred_element_type=f32)
    y = y + bcv2_ref[...]
    y = y * jax.nn.sigmoid(y)
    o_ref[0] = (y + x.astype(f32)).astype(o_ref.dtype)


def _conv_2in_silu_kernel(a_ref, b_ref, wa_ref, wb_ref, bias_ref, o_ref):
    # cv3 without materializing concat([m, y2]): split-row weights.
    y = jnp.dot(a_ref[...], wa_ref[...], preferred_element_type=jnp.float32)
    y = y + jnp.dot(b_ref[...], wb_ref[...], preferred_element_type=jnp.float32)
    y = y + bias_ref[...]
    y = y * jax.nn.sigmoid(y)
    o_ref[...] = y.astype(o_ref.dtype)


# ---------------------------------------------------------------------------
# Pallas wrappers
# ---------------------------------------------------------------------------
def conv1x1_dual_silu(x, wcat, bcat):
    """y1, y2 = SiLU(BN(conv{1,2}(x))) with one fused weight matmul."""
    N, cin = x.shape
    ctot = wcat.shape[1]
    c_ = ctot // 2
    tn = _row_tile(N)
    itemsize = jnp.dtype(x.dtype).itemsize
    vmem = _vmem_limit(8 * tn * (cin + ctot) * 4)
    return pl.pallas_call(
        functools.partial(_conv_dual_silu_kernel, split=c_),
        grid=(N // tn,),
        in_specs=[
            pl.BlockSpec((tn, cin), lambda i: (i, 0)),
            pl.BlockSpec((cin, ctot), lambda i: (0, 0)),
            pl.BlockSpec((1, ctot), lambda i: (0, 0)),
        ],
        out_specs=(
            pl.BlockSpec((tn, c_), lambda i: (i, 0)),
            pl.BlockSpec((tn, c_), lambda i: (i, 0)),
        ),
        out_shape=(
            jax.ShapeDtypeStruct((N, c_), x.dtype),
            jax.ShapeDtypeStruct((N, c_), x.dtype),
        ),
        compiler_params=pltpu.CompilerParams(
            dimension_semantics=("parallel",), vmem_limit_bytes=vmem),
        cost_estimate=_cost(2 * N * cin * ctot, N * ctot, (x, wcat, bcat),
                            N * ctot * itemsize),
    )(x, wcat, bcat.reshape(1, ctot))


def bottleneck_fused(x_b3, p):
    """One pallas_call per ExtraPositionPromptSABottleneck, grid over batch."""
    B, HW, nd = x_b3.shape
    C = p["cv1_w"].shape[1]
    c2c = 2 * C
    dt = x_b3.dtype
    itemsize = jnp.dtype(dt).itemsize
    need = (4 * HW * nd * itemsize           # x / out blocks, double-buffered
            + HW * c2c * 4                   # [q-bias | pos] additive term
            + 6 * HW * HW * 4                # energy / p (f32) + headroom
            + 16 * HW * max(nd, c2c) * 4)    # x1 / ke / qp / v / out temps
    w2d = lambda shp: pl.BlockSpec(shp, lambda b: (0, 0))
    flops = B * (2 * HW * nd * C                 # cv1
                 + 2 * HW * C * (2 * c2c + C)    # ke + qp + v projections
                 + 2 * HW * HW * c2c             # energy
                 + 2 * HW * HW * C               # attn @ v
                 + 2 * HW * C * nd)              # cv2
    transc = B * (HW * HW + HW * (C + nd))
    return pl.pallas_call(
        _bottleneck_kernel,
        grid=(B,),
        in_specs=[
            pl.BlockSpec((1, HW, nd), lambda b: (b, 0, 0)),   # x (per batch)
            w2d((HW, c2c)),                                   # [q-bias | pos]
            w2d((nd, C)), w2d((1, C)),                        # cv1
            w2d((C, c2c)), w2d((1, c2c)),                     # [k | e]
            w2d((C, c2c)),                                    # [q | 0]
            w2d((C, C)), w2d((1, C)),                         # v
            w2d((C, nd)), w2d((1, nd)),                       # cv2
        ],
        out_specs=pl.BlockSpec((1, HW, nd), lambda b: (b, 0, 0)),
        out_shape=jax.ShapeDtypeStruct((B, HW, nd), dt),
        compiler_params=pltpu.CompilerParams(
            dimension_semantics=("parallel",),
            vmem_limit_bytes=_vmem_limit(need)),
        cost_estimate=_cost(flops, transc,
                            (x_b3, p["qp_posb"], p["cv1_w"], p["ke_w"],
                             p["qp_w"], p["v_w"], p["cv2_w"]),
                            B * HW * nd * itemsize),
    )(x_b3, p["qp_posb"],
      p["cv1_w"], p["cv1_b"].reshape(1, C),
      p["ke_w"], p["ke_b"].reshape(1, c2c),
      p["qp_w"],
      p["v_w"], p["v_b"].reshape(1, C),
      p["cv2_w"], p["cv2_b"].reshape(1, nd))


def conv1x1_2in_silu(a, b_in, wa, wb, bias):
    """cv3: SiLU(BN(conv(concat([a, b])))) via split-row weights."""
    N, ca = a.shape
    cb = b_in.shape[1]
    cout = wa.shape[1]
    tn = _row_tile(N)
    itemsize = jnp.dtype(a.dtype).itemsize
    vmem = _vmem_limit(8 * tn * (ca + cb + cout) * 4)
    return pl.pallas_call(
        _conv_2in_silu_kernel,
        grid=(N // tn,),
        in_specs=[
            pl.BlockSpec((tn, ca), lambda i: (i, 0)),
            pl.BlockSpec((tn, cb), lambda i: (i, 0)),
            pl.BlockSpec((ca, cout), lambda i: (0, 0)),
            pl.BlockSpec((cb, cout), lambda i: (0, 0)),
            pl.BlockSpec((1, cout), lambda i: (0, 0)),
        ],
        out_specs=pl.BlockSpec((tn, cout), lambda i: (i, 0)),
        out_shape=jax.ShapeDtypeStruct((N, cout), a.dtype),
        compiler_params=pltpu.CompilerParams(
            dimension_semantics=("parallel",), vmem_limit_bytes=vmem),
        cost_estimate=_cost(2 * N * (ca + cb) * cout, N * cout,
                            (a, b_in, wa, wb, bias), N * cout * itemsize),
    )(a, b_in, wa, wb, bias.reshape(1, cout))


# ---------------------------------------------------------------------------
# Deterministic parameter construction (BN scale folded into the weight)
# ---------------------------------------------------------------------------
def make_conv_bn_params(key, cin, cout):
    # Conv2d(k=1, bias=False) + BatchNorm2d (eval mode) -> folded weight + bias.
    kw, kg, kb, km, kv = jax.random.split(key, 5)
    w = 0.1 * jax.random.normal(kw, (cin, cout), jnp.float32)
    gamma = 1.0 + 0.1 * jax.random.normal(kg, (cout,), jnp.float32)
    beta = 0.1 * jax.random.normal(kb, (cout,), jnp.float32)
    mean = 0.1 * jax.random.normal(km, (cout,), jnp.float32)
    var = jnp.abs(jax.random.normal(kv, (cout,), jnp.float32)) + 0.5
    eps = 1e-5
    scale = gamma / jnp.sqrt(var + eps)
    bias = beta - mean * scale
    # (x @ W) * s + b == x @ (W * s) + b  -> fold scale into the weight once.
    return dict(w=(w * scale[None, :]).astype(_COMPUTE), b=bias)


def make_linear_params(key, cin, cout):
    # Conv2d(k=1, bias=True): matmul + bias.
    kw, kb = jax.random.split(key)
    w = 0.1 * jax.random.normal(kw, (cin, cout), jnp.float32)
    b = 0.1 * jax.random.normal(kb, (cout,), jnp.float32)
    return dict(w=w.astype(_COMPUTE), b=b)


def make_bottleneck_params(key, n_dims, size):
    C = n_dims // 2
    HW = size * size
    ks = jax.random.split(key, 8)
    cv1 = make_conv_bn_params(ks[0], n_dims, C)
    cv2 = make_conv_bn_params(ks[1], C, n_dims)
    q = make_linear_params(ks[2], C, C)
    k = make_linear_params(ks[3], C, C)
    v = make_linear_params(ks[4], C, C)
    ex = make_linear_params(ks[5], C, C)
    rel_h = jax.random.normal(ks[6], (C, size, 1), jnp.float32)
    rel_w = jax.random.normal(ks[7], (C, 1, size), jnp.float32)
    # pos[h*W + w, c] = rel_h[c, h, 0] + rel_w[c, 0, w] (matches torch view/permute)
    pos = (rel_h + rel_w).transpose(1, 2, 0).reshape(HW, C)
    return dict(
        cv1_w=cv1["w"], cv1_b=cv1["b"],
        # rhs of the energy contraction: fused [k | e] projection
        ke_w=jnp.concatenate([k["w"], ex["w"]], axis=1),
        ke_b=jnp.concatenate([k["b"], ex["b"]], axis=0),
        # lhs of the energy contraction: [q | pos] via zero-padded q weight and
        # a precomputed per-token additive term [q-bias | positional prompt]
        qp_w=jnp.concatenate([q["w"], jnp.zeros((C, C), _COMPUTE)], axis=1),
        qp_posb=jnp.concatenate([jnp.broadcast_to(q["b"], (HW, C)), pos], axis=1),
        v_w=v["w"], v_b=v["b"],
        cv2_w=cv2["w"], cv2_b=cv2["b"],
    )


def make_params(key, c1, c2, size, n_blocks, e):
    c_ = int(c2 * e)
    pk = jax.random.split(key, 3 + n_blocks)
    cv1 = make_conv_bn_params(pk[0], c1, c_)
    cv2 = make_conv_bn_params(pk[1], c1, c_)
    cv3 = make_conv_bn_params(pk[2], 2 * c_, c2)
    return dict(
        # top-level cv1/cv2 fused into one (c1, 2*c_) weight
        cv12_w=jnp.concatenate([cv1["w"], cv2["w"]], axis=1),
        cv12_b=jnp.concatenate([cv1["b"], cv2["b"]], axis=0),
        # split cv3 rows so concat([m, y2]) never hits HBM
        cv3_wa=cv3["w"][:c_, :], cv3_wb=cv3["w"][c_:, :], cv3_b=cv3["b"],
        m=[make_bottleneck_params(pk[3 + i], c_, size) for i in range(n_blocks)],
    )


# ---------------------------------------------------------------------------
# Forward pass
# ---------------------------------------------------------------------------
def c3_res_atn_mhsa(x_nchw, params):
    """C3ResAtnMHSA forward. Input NCHW, output NCHW."""
    B, c1, H, W = x_nchw.shape
    x_tok = (jnp.transpose(x_nchw, (0, 2, 3, 1))
             .reshape(B * H * W, c1)
             .astype(_COMPUTE))
    y1, y2 = conv1x1_dual_silu(x_tok, params["cv12_w"], params["cv12_b"])
    m = y1.reshape(B, H * W, -1)           # free reshape (row-major contiguous)
    for blk in params["m"]:
        m = bottleneck_fused(m, blk)       # one fused kernel per bottleneck
    out = conv1x1_2in_silu(m.reshape(B * H * W, -1), y2,
                           params["cv3_wa"], params["cv3_wb"], params["cv3_b"])
    c2 = out.shape[-1]
    return (out.reshape(B, H, W, c2)
            .transpose(0, 3, 1, 2)
            .astype(x_nchw.dtype))


# ---------------------------------------------------------------------------
# Driver
# ---------------------------------------------------------------------------
if __name__ == "__main__":
    B, c1, c2, size, n_blocks, e = 2, 16, 16, 8, 1, 0.5
    key = jax.random.PRNGKey(0)
    kx, kp = jax.random.split(key)
    x = jax.random.normal(kx, (B, c1, size, size), jnp.float32)
    params = make_params(kp, c1, c2, size, n_blocks, e)

    fwd = jax.jit(lambda xx: c3_res_atn_mhsa(xx, params))
    out = fwd(x)
    jax.block_until_ready(out)
    assert out.shape == (B, c2, size, size), out.shape
    assert bool(jnp.all(jnp.isfinite(out)))
    print("KERNEL_OK")
</pallas_src>

<mosaic_0001>
module attributes {stable_mosaic.version = 11 : i64} {
  func.func @_bottleneck_kernel(%arg0: i32, %arg1: memref<1x64x8xbf16, #tpu.memory_space<vmem>>, %arg2: memref<64x8xf32, #tpu.memory_space<vmem>>, %arg3: memref<8x4xbf16, #tpu.memory_space<vmem>>, %arg4: memref<1x4xf32, #tpu.memory_space<vmem>>, %arg5: memref<4x8xbf16, #tpu.memory_space<vmem>>, %arg6: memref<1x8xf32, #tpu.memory_space<vmem>>, %arg7: memref<4x8xbf16, #tpu.memory_space<vmem>>, %arg8: memref<4x4xbf16, #tpu.memory_space<vmem>>, %arg9: memref<1x4xf32, #tpu.memory_space<vmem>>, %arg10: memref<4x8xbf16, #tpu.memory_space<vmem>>, %arg11: memref<1x8xf32, #tpu.memory_space<vmem>>, %arg12: memref<1x64x8xbf16, #tpu.memory_space<vmem>>) attributes {dimension_semantics = [#tpu.dimension_semantics<parallel>], iteration_bounds = array<i64: 2>, scalar_prefetch = 0 : i64, scratch_operands = 0 : i64, tpu.core_type = #tpu.core_type<tc>, window_params = [{transform_indices = @transform_0, window_bounds = array<i64: 1, 64, 8>}, {pipeline_mode = #tpu.pipeline_mode<synchronous>, transform_indices = @transform_1, window_bounds = array<i64: 64, 8>}, {pipeline_mode = #tpu.pipeline_mode<synchronous>, transform_indices = @transform_2, window_bounds = array<i64: 8, 4>}, {pipeline_mode = #tpu.pipeline_mode<synchronous>, transform_indices = @transform_3, window_bounds = array<i64: 1, 4>}, {pipeline_mode = #tpu.pipeline_mode<synchronous>, transform_indices = @transform_4, window_bounds = array<i64: 4, 8>}, {pipeline_mode = #tpu.pipeline_mode<synchronous>, transform_indices = @transform_5, window_bounds = array<i64: 1, 8>}, {pipeline_mode = #tpu.pipeline_mode<synchronous>, transform_indices = @transform_6, window_bounds = array<i64: 4, 8>}, {pipeline_mode = #tpu.pipeline_mode<synchronous>, transform_indices = @transform_7, window_bounds = array<i64: 4, 4>}, {pipeline_mode = #tpu.pipeline_mode<synchronous>, transform_indices = @transform_8, window_bounds = array<i64: 1, 4>}, {pipeline_mode = #tpu.pipeline_mode<synchronous>, transform_indices = @transform_9, window_bounds = array<i64: 4, 8>}, {pipeline_mode = #tpu.pipeline_mode<synchronous>, transform_indices = @transform_10, window_bounds = array<i64: 1, 8>}, {transform_indices = @transform_11, window_bounds = array<i64: 1, 64, 8>}]} {
    %c0 = arith.constant 0 : index
    %c0_0 = arith.constant 0 : index
    %c0_1 = arith.constant 0 : index
    %0 = vector.load %arg1[%c0, %c0_0, %c0_1] : memref<1x64x8xbf16, #tpu.memory_space<vmem>>, vector<1x64x8xbf16>
    %1 = vector.shape_cast %0 : vector<1x64x8xbf16> to vector<64x8xbf16>
    %c0_2 = arith.constant 0 : index
    %c0_3 = arith.constant 0 : index
    %2 = vector.load %arg3[%c0_2, %c0_3] : memref<8x4xbf16, #tpu.memory_space<vmem>>, vector<8x4xbf16>
    %cst = arith.constant dense<0.000000e+00> : vector<64x4xf32>
    %3 = tpu.matmul %1, %2, %cst {dimension_numbers = #tpu.dot_dimension_numbers<[1], [0], [0], [1], [0, 0, 1, 1], [], []>} : vector<64x8xbf16>, vector<8x4xbf16>, vector<64x4xf32> -> vector<64x4xf32>
    %c0_4 = arith.constant 0 : index
    %c0_5 = arith.constant 0 : index
    %4 = vector.load %arg4[%c0_4, %c0_5] : memref<1x4xf32, #tpu.memory_space<vmem>>, vector<1x4xf32>
    %5 = vector.broadcast %4 : vector<1x4xf32> to vector<64x4xf32>
    %6 = arith.addf %3, %5 : vector<64x4xf32>
    %7 = arith.negf %6 : vector<64x4xf32>
    %8 = math.exp %7 : vector<64x4xf32>
    %cst_6 = arith.constant 1.000000e+00 : f32
    %9 = vector.broadcast %cst_6 : f32 to vector<64x4xf32>
    %10 = arith.addf %9, %8 : vector<64x4xf32>
    %11 = arith.divf %9, %10 : vector<64x4xf32>
    %12 = arith.mulf %6, %11 : vector<64x4xf32>
    %13 = arith.truncf %12 : vector<64x4xf32> to vector<64x4xbf16>
    %c0_7 = arith.constant 0 : index
    %c0_8 = arith.constant 0 : index
    %14 = vector.load %arg5[%c0_7, %c0_8] : memref<4x8xbf16, #tpu.memory_space<vmem>>, vector<4x8xbf16>
    %cst_9 = arith.constant dense<0.000000e+00> : vector<64x8xf32>
    %15 = tpu.matmul %13, %14, %cst_9 {dimension_numbers = #tpu.dot_dimension_numbers<[1], [0], [0], [1], [0, 0, 1, 1], [], []>} : vector<64x4xbf16>, vector<4x8xbf16>, vector<64x8xf32> -> vector<64x8xf32>
    %c0_10 = arith.constant 0 : index
    %c0_11 = arith.constant 0 : index
    %16 = vector.load %arg6[%c0_10, %c0_11] : memref<1x8xf32, #tpu.memory_space<vmem>>, vector<1x8xf32>
    %17 = vector.broadcast %16 : vector<1x8xf32> to vector<64x8xf32>
    %18 = arith.addf %15, %17 : vector<64x8xf32>
    %c0_12 = arith.constant 0 : index
    %c0_13 = arith.constant 0 : index
    %19 = vector.load %arg7[%c0_12, %c0_13] : memref<4x8xbf16, #tpu.memory_space<vmem>>, vector<4x8xbf16>
    %cst_14 = arith.constant dense<0.000000e+00> : vector<64x8xf32>
    %20 = tpu.matmul %13, %19, %cst_14 {dimension_numbers = #tpu.dot_dimension_numbers<[1], [0], [0], [1], [0, 0, 1, 1], [], []>} : vector<64x4xbf16>, vector<4x8xbf16>, vector<64x8xf32> -> vector<64x8xf32>
    %c0_15 = arith.constant 0 : index
    %c0_16 = arith.constant 0 : index
    %21 = vector.load %arg2[%c0_15, %c0_16] : memref<64x8xf32, #tpu.memory_space<vmem>>, vector<64x8xf32>
    %22 = arith.addf %20, %21 : vector<64x8xf32>
    %23 = arith.truncf %22 : vector<64x8xf32> to vector<64x8xbf16>
    %24 = arith.truncf %18 : vector<64x8xf32> to vector<64x8xbf16>
    %cst_17 = arith.constant dense<0.000000e+00> : vector<64x64xf32>
    %25 = tpu.matmul %23, %24, %cst_17 {dimension_numbers = #tpu.dot_dimension_numbers<[1], [1], [0], [0], [0, 0, 1, 0], [], []>} : vector<64x8xbf16>, vector<64x8xbf16>, vector<64x64xf32> -> vector<64x64xf32>
    %cst_18 = arith.constant dense<0xFF800000> : vector<64xf32>
    %26 = vector.multi_reduction <maximumf>, %25, %cst_18 [1] : vector<64x64xf32> to vector<64xf32>
    %27 = vector.shape_cast %26 : vector<64xf32> to vector<64x1xf32>
    %28 = vector.broadcast %27 : vector<64x1xf32> to vector<64x64xf32>
    %29 = arith.subf %25, %28 : vector<64x64xf32>
    %30 = math.exp %29 : vector<64x64xf32>
    %cst_19 = arith.constant dense<0.000000e+00> : vector<64xf32>
    %31 = vector.multi_reduction <add>, %30, %cst_19 [1] : vector<64x64xf32> to vector<64xf32>
    %32 = vector.shape_cast %31 : vector<64xf32> to vector<64x1xf32>
    %c0_20 = arith.constant 0 : index
    %c0_21 = arith.constant 0 : index
    %33 = vector.load %arg8[%c0_20, %c0_21] : memref<4x4xbf16, #tpu.memory_space<vmem>>, vector<4x4xbf16>
    %cst_22 = arith.constant dense<0.000000e+00> : vector<64x4xf32>
    %34 = tpu.matmul %13, %33, %cst_22 {dimension_numbers = #tpu.dot_dimension_numbers<[1], [0], [0], [1], [0, 0, 1, 1], [], []>} : vector<64x4xbf16>, vector<4x4xbf16>, vector<64x4xf32> -> vector<64x4xf32>
    %c0_23 = arith.constant 0 : index
    %c0_24 = arith.constant 0 : index
    %35 = vector.load %arg9[%c0_23, %c0_24] : memref<1x4xf32, #tpu.memory_space<vmem>>, vector<1x4xf32>
    %36 = vector.broadcast %35 : vector<1x4xf32> to vector<64x4xf32>
    %37 = arith.addf %34, %36 : vector<64x4xf32>
    %38 = arith.truncf %37 : vector<64x4xf32> to vector<64x4xbf16>
    %39 = arith.truncf %30 : vector<64x64xf32> to vector<64x64xbf16>
    %cst_25 = arith.constant dense<0.000000e+00> : vector<64x4xf32>
    %40 = tpu.matmul %39, %38, %cst_25 {dimension_numbers = #tpu.dot_dimension_numbers<[1], [0], [0], [1], [0, 0, 1, 1], [], []>} : vector<64x64xbf16>, vector<64x4xbf16>, vector<64x4xf32> -> vector<64x4xf32>
    %41 = tpu.reciprocal %32 : vector<64x1xf32> -> vector<64x1xf32>
    %42 = vector.broadcast %41 : vector<64x1xf32> to vector<64x4xf32>
    %43 = arith.mulf %40, %42 : vector<64x4xf32>
    %44 = arith.truncf %43 : vector<64x4xf32> to vector<64x4xbf16>
    %c0_26 = arith.constant 0 : index
    %c0_27 = arith.constant 0 : index
    %45 = vector.load %arg10[%c0_26, %c0_27] : memref<4x8xbf16, #tpu.memory_space<vmem>>, vector<4x8xbf16>
    %cst_28 = arith.constant dense<0.000000e+00> : vector<64x8xf32>
    %46 = tpu.matmul %44, %45, %cst_28 {dimension_numbers = #tpu.dot_dimension_numbers<[1], [0], [0], [1], [0, 0, 1, 1], [], []>} : vector<64x4xbf16>, vector<4x8xbf16>, vector<64x8xf32> -> vector<64x8xf32>
    %c0_29 = arith.constant 0 : index
    %c0_30 = arith.constant 0 : index
    %47 = vector.load %arg11[%c0_29, %c0_30] : memref<1x8xf32, #tpu.memory_space<vmem>>, vector<1x8xf32>
    %48 = vector.broadcast %47 : vector<1x8xf32> to vector<64x8xf32>
    %49 = arith.addf %46, %48 : vector<64x8xf32>
    %50 = arith.negf %49 : vector<64x8xf32>
    %51 = math.exp %50 : vector<64x8xf32>
    %cst_31 = arith.constant 1.000000e+00 : f32
    %52 = vector.broadcast %cst_31 : f32 to vector<64x8xf32>
    %53 = arith.addf %52, %51 : vector<64x8xf32>
    %54 = arith.divf %52, %53 : vector<64x8xf32>
    %55 = arith.mulf %49, %54 : vector<64x8xf32>
    %56 = arith.extf %1 : vector<64x8xbf16> to vector<64x8xf32>
    %57 = arith.addf %55, %56 : vector<64x8xf32>
    %58 = arith.truncf %57 : vector<64x8xf32> to vector<64x8xbf16>
    %c0_32 = arith.constant 0 : index
    %c0_33 = arith.constant 0 : index
    %c0_34 = arith.constant 0 : index
    %59 = vector.load %arg12[%c0_32, %c0_33, %c0_34] : memref<1x64x8xbf16, #tpu.memory_space<vmem>>, vector<1x64x8xbf16>
    %60 = vector.shape_cast %59 : vector<1x64x8xbf16> to vector<64x8xbf16>
    %61 = vector.shape_cast %58 : vector<64x8xbf16> to vector<1x64x8xbf16>
    tpu.vector_store %arg12[%c0_32, %c0_33, %c0_34], %61 {strides = array<i32>} : memref<1x64x8xbf16, #tpu.memory_space<vmem>>, vector<1x64x8xbf16>,
    return
  }
  func.func @transform_0(%arg0: i32) -> (i32, i32, i32) {
    %c0_i32 = arith.constant 0 : i32
    %c0_i32_0 = arith.constant 0 : i32
    %c0_i32_1 = arith.constant 0 : i32
    return %arg0, %c0_i32, %c0_i32_0 : i32, i32, i32
  }
  func.func @transform_1(%arg0: i32) -> (i32, i32) {
    %c0_i32 = arith.constant 0 : i32
    %c0_i32_0 = arith.constant 0 : i32
    %c0_i32_1 = arith.constant 0 : i32
    return %c0_i32, %c0_i32_0 : i32, i32
  }
  func.func @transform_2(%arg0: i32) -> (i32, i32) {
    %c0_i32 = arith.constant 0 : i32
    %c0_i32_0 = arith.constant 0 : i32
    %c0_i32_1 = arith.constant 0 : i32
    return %c0_i32, %c0_i32_0 : i32, i32
  }
  func.func @transform_3(%arg0: i32) -> (i32, i32) {
    %c0_i32 = arith.constant 0 : i32
    %c0_i32_0 = arith.constant 0 : i32
    %c0_i32_1 = arith.constant 0 : i32
    return %c0_i32, %c0_i32_0 : i32, i32
  }
  func.func @transform_4(%arg0: i32) -> (i32, i32) {
    %c0_i32 = arith.constant 0 : i32
    %c0_i32_0 = arith.constant 0 : i32
    %c0_i32_1 = arith.constant 0 : i32
    return %c0_i32, %c0_i32_0 : i32, i32
  }
  func.func @transform_5(%arg0: i32) -> (i32, i32) {
    %c0_i32 = arith.constant 0 : i32
    %c0_i32_0 = arith.constant 0 : i32
    %c0_i32_1 = arith.constant 0 : i32
    return %c0_i32, %c0_i32_0 : i32, i32
  }
  func.func @transform_6(%arg0: i32) -> (i32, i32) {
    %c0_i32 = arith.constant 0 : i32
    %c0_i32_0 = arith.constant 0 : i32
    %c0_i32_1 = arith.constant 0 : i32
    return %c0_i32, %c0_i32_0 : i32, i32
  }
  func.func @transform_7(%arg0: i32) -> (i32, i32) {
    %c0_i32 = arith.constant 0 : i32
    %c0_i32_0 = arith.constant 0 : i32
    %c0_i32_1 = arith.constant 0 : i32
    return %c0_i32, %c0_i32_0 : i32, i32
  }
  func.func @transform_8(%arg0: i32) -> (i32, i32) {
    %c0_i32 = arith.constant 0 : i32
    %c0_i32_0 = arith.constant 0 : i32
    %c0_i32_1 = arith.constant 0 : i32
    return %c0_i32, %c0_i32_0 : i32, i32
  }
  func.func @transform_9(%arg0: i32) -> (i32, i32) {
    %c0_i32 = arith.constant 0 : i32
    %c0_i32_0 = arith.constant 0 : i32
    %c0_i32_1 = arith.constant 0 : i32
    return %c0_i32, %c0_i32_0 : i32, i32
  }
  func.func @transform_10(%arg0: i32) -> (i32, i32) {
    %c0_i32 = arith.constant 0 : i32
    %c0_i32_0 = arith.constant 0 : i32
    %c0_i32_1 = arith.constant 0 : i32
    return %c0_i32, %c0_i32_0 : i32, i32
  }
  func.func @transform_11(%arg0: i32) -> (i32, i32, i32) {
    %c0_i32 = arith.constant 0 : i32
    %c0_i32_0 = arith.constant 0 : i32
    %c0_i32_1 = arith.constant 0 : i32
    return %arg0, %c0_i32, %c0_i32_0 : i32, i32, i32
  }
}

module attributes {stable_mosaic.version = 11 : i64} {
  func.func @_conv_dual_silu_kernel(%arg0: i32, %arg1: memref<64x16xbf16, #tpu.memory_space<vmem>>, %arg2: memref<16x16xbf16, #tpu.memory_space<vmem>>, %arg3: memref<1x16xf32, #tpu.memory_space<vmem>>, %arg4: memref<64x8xbf16, #tpu.memory_space<vmem>>, %arg5: memref<64x8xbf16, #tpu.memory_space<vmem>>) attributes {dimension_semantics = [#tpu.dimension_semantics<parallel>], iteration_bounds = array<i64: 2>, scalar_prefetch = 0 : i64, scratch_operands = 0 : i64, tpu.core_type = #tpu.core_type<tc>, window_params = [{transform_indices = @transform_0, window_bounds = array<i64: 64, 16>}, {pipeline_mode = #tpu.pipeline_mode<synchronous>, transform_indices = @transform_1, window_bounds = array<i64: 16, 16>}, {pipeline_mode = #tpu.pipeline_mode<synchronous>, transform_indices = @transform_2, window_bounds = array<i64: 1, 16>}, {transform_indices = @transform_3, window_bounds = array<i64: 64, 8>}, {transform_indices = @transform_4, window_bounds = array<i64: 64, 8>}]} {
    %c0 = arith.constant 0 : index
    %c0_0 = arith.constant 0 : index
    %0 = vector.load %arg1[%c0, %c0_0] : memref<64x16xbf16, #tpu.memory_space<vmem>>, vector<64x16xbf16>
    %c0_1 = arith.constant 0 : index
    %c0_2 = arith.constant 0 : index
    %1 = vector.load %arg2[%c0_1, %c0_2] : memref<16x16xbf16, #tpu.memory_space<vmem>>, vector<16x16xbf16>
    %cst = arith.constant dense<0.000000e+00> : vector<64x16xf32>
    %2 = tpu.matmul %0, %1, %cst {dimension_numbers = #tpu.dot_dimension_numbers<[1], [0], [0], [1], [0, 0, 1, 1], [], []>} : vector<64x16xbf16>, vector<16x16xbf16>, vector<64x16xf32> -> vector<64x16xf32>
    %c0_3 = arith.constant 0 : index
    %c0_4 = arith.constant 0 : index
    %3 = vector.load %arg3[%c0_3, %c0_4] : memref<1x16xf32, #tpu.memory_space<vmem>>, vector<1x16xf32>
    %4 = vector.broadcast %3 : vector<1x16xf32> to vector<64x16xf32>
    %5 = arith.addf %2, %4 : vector<64x16xf32>
    %6 = arith.negf %5 : vector<64x16xf32>
    %7 = math.exp %6 : vector<64x16xf32>
    %cst_5 = arith.constant 1.000000e+00 : f32
    %8 = vector.broadcast %cst_5 : f32 to vector<64x16xf32>
    %9 = arith.addf %8, %7 : vector<64x16xf32>
    %10 = arith.divf %8, %9 : vector<64x16xf32>
    %11 = arith.mulf %5, %10 : vector<64x16xf32>
    %12 = vector.extract_strided_slice %11 {offsets = [0, 0], sizes = [64, 8], strides = [1, 1]} : vector<64x16xf32> to vector<64x8xf32>
    %13 = arith.truncf %12 : vector<64x8xf32> to vector<64x8xbf16>
    %c0_6 = arith.constant 0 : index
    %c0_7 = arith.constant 0 : index
    %14 = vector.load %arg4[%c0_6, %c0_7] : memref<64x8xbf16, #tpu.memory_space<vmem>>, vector<64x8xbf16>
    tpu.vector_store %arg4[%c0_6, %c0_7], %13 {strides = array<i32>} : memref<64x8xbf16, #tpu.memory_space<vmem>>, vector<64x8xbf16>,
    %15 = vector.extract_strided_slice %11 {offsets = [0, 8], sizes = [64, 8], strides = [1, 1]} : vector<64x16xf32> to vector<64x8xf32>
    %16 = arith.truncf %15 : vector<64x8xf32> to vector<64x8xbf16>
    %c0_8 = arith.constant 0 : index
    %c0_9 = arith.constant 0 : index
    %17 = vector.load %arg5[%c0_8, %c0_9] : memref<64x8xbf16, #tpu.memory_space<vmem>>, vector<64x8xbf16>
    tpu.vector_store %arg5[%c0_8, %c0_9], %16 {strides = array<i32>} : memref<64x8xbf16, #tpu.memory_space<vmem>>, vector<64x8xbf16>,
    return
  }
  func.func @transform_0(%arg0: i32) -> (i32, i32) {
    %c0_i32 = arith.constant 0 : i32
    %c0_i32_0 = arith.constant 0 : i32
    return %arg0, %c0_i32 : i32, i32
  }
  func.func @transform_1(%arg0: i32) -> (i32, i32) {
    %c0_i32 = arith.constant 0 : i32
    %c0_i32_0 = arith.constant 0 : i32
    %c0_i32_1 = arith.constant 0 : i32
    return %c0_i32, %c0_i32_0 : i32, i32
  }
  func.func @transform_2(%arg0: i32) -> (i32, i32) {
    %c0_i32 = arith.constant 0 : i32
    %c0_i32_0 = arith.constant 0 : i32
    %c0_i32_1 = arith.constant 0 : i32
    return %c0_i32, %c0_i32_0 : i32, i32
  }
  func.func @transform_3(%arg0: i32) -> (i32, i32) {
    %c0_i32 = arith.constant 0 : i32
    %c0_i32_0 = arith.constant 0 : i32
    return %arg0, %c0_i32 : i32, i32
  }
  func.func @transform_4(%arg0: i32) -> (i32, i32) {
    %c0_i32 = arith.constant 0 : i32
    %c0_i32_0 = arith.constant 0 : i32
    return %arg0, %c0_i32 : i32, i32
  }
}

module attributes {stable_mosaic.version = 11 : i64} {
  func.func @_conv_2in_silu_kernel(%arg0: i32, %arg1: memref<64x8xbf16, #tpu.memory_space<vmem>>, %arg2: memref<64x8xbf16, #tpu.memory_space<vmem>>, %arg3: memref<8x16xbf16, #tpu.memory_space<vmem>>, %arg4: memref<8x16xbf16, #tpu.memory_space<vmem>>, %arg5: memref<1x16xf32, #tpu.memory_space<vmem>>, %arg6: memref<64x16xbf16, #tpu.memory_space<vmem>>) attributes {dimension_semantics = [#tpu.dimension_semantics<parallel>], iteration_bounds = array<i64: 2>, scalar_prefetch = 0 : i64, scratch_operands = 0 : i64, tpu.core_type = #tpu.core_type<tc>, window_params = [{transform_indices = @transform_0, window_bounds = array<i64: 64, 8>}, {transform_indices = @transform_1, window_bounds = array<i64: 64, 8>}, {pipeline_mode = #tpu.pipeline_mode<synchronous>, transform_indices = @transform_2, window_bounds = array<i64: 8, 16>}, {pipeline_mode = #tpu.pipeline_mode<synchronous>, transform_indices = @transform_3, window_bounds = array<i64: 8, 16>}, {pipeline_mode = #tpu.pipeline_mode<synchronous>, transform_indices = @transform_4, window_bounds = array<i64: 1, 16>}, {transform_indices = @transform_5, window_bounds = array<i64: 64, 16>}]} {
    %c0 = arith.constant 0 : index
    %c0_0 = arith.constant 0 : index
    %0 = vector.load %arg1[%c0, %c0_0] : memref<64x8xbf16, #tpu.memory_space<vmem>>, vector<64x8xbf16>
    %c0_1 = arith.constant 0 : index
    %c0_2 = arith.constant 0 : index
    %1 = vector.load %arg3[%c0_1, %c0_2] : memref<8x16xbf16, #tpu.memory_space<vmem>>, vector<8x16xbf16>
    %cst = arith.constant dense<0.000000e+00> : vector<64x16xf32>
    %2 = tpu.matmul %0, %1, %cst {dimension_numbers = #tpu.dot_dimension_numbers<[1], [0], [0], [1], [0, 0, 1, 1], [], []>} : vector<64x8xbf16>, vector<8x16xbf16>, vector<64x16xf32> -> vector<64x16xf32>
    %c0_3 = arith.constant 0 : index
    %c0_4 = arith.constant 0 : index
    %3 = vector.load %arg2[%c0_3, %c0_4] : memref<64x8xbf16, #tpu.memory_space<vmem>>, vector<64x8xbf16>
    %c0_5 = arith.constant 0 : index
    %c0_6 = arith.constant 0 : index
    %4 = vector.load %arg4[%c0_5, %c0_6] : memref<8x16xbf16, #tpu.memory_space<vmem>>, vector<8x16xbf16>
    %cst_7 = arith.constant dense<0.000000e+00> : vector<64x16xf32>
    %5 = tpu.matmul %3, %4, %cst_7 {dimension_numbers = #tpu.dot_dimension_numbers<[1], [0], [0], [1], [0, 0, 1, 1], [], []>} : vector<64x8xbf16>, vector<8x16xbf16>, vector<64x16xf32> -> vector<64x16xf32>
    %6 = arith.addf %2, %5 : vector<64x16xf32>
    %c0_8 = arith.constant 0 : index
    %c0_9 = arith.constant 0 : index
    %7 = vector.load %arg5[%c0_8, %c0_9] : memref<1x16xf32, #tpu.memory_space<vmem>>, vector<1x16xf32>
    %8 = vector.broadcast %7 : vector<1x16xf32> to vector<64x16xf32>
    %9 = arith.addf %6, %8 : vector<64x16xf32>
    %10 = arith.negf %9 : vector<64x16xf32>
    %11 = math.exp %10 : vector<64x16xf32>
    %cst_10 = arith.constant 1.000000e+00 : f32
    %12 = vector.broadcast %cst_10 : f32 to vector<64x16xf32>
    %13 = arith.addf %12, %11 : vector<64x16xf32>
    %14 = arith.divf %12, %13 : vector<64x16xf32>
    %15 = arith.mulf %9, %14 : vector<64x16xf32>
    %16 = arith.truncf %15 : vector<64x16xf32> to vector<64x16xbf16>
    %c0_11 = arith.constant 0 : index
    %c0_12 = arith.constant 0 : index
    %17 = vector.load %arg6[%c0_11, %c0_12] : memref<64x16xbf16, #tpu.memory_space<vmem>>, vector<64x16xbf16>
    tpu.vector_store %arg6[%c0_11, %c0_12], %16 {strides = array<i32>} : memref<64x16xbf16, #tpu.memory_space<vmem>>, vector<64x16xbf16>,
    return
  }
  func.func @transform_0(%arg0: i32) -> (i32, i32) {
    %c0_i32 = arith.constant 0 : i32
    %c0_i32_0 = arith.constant 0 : i32
    return %arg0, %c0_i32 : i32, i32
  }
  func.func @transform_1(%arg0: i32) -> (i32, i32) {
    %c0_i32 = arith.constant 0 : i32
    %c0_i32_0 = arith.constant 0 : i32
    return %arg0, %c0_i32 : i32, i32
  }
  func.func @transform_2(%arg0: i32) -> (i32, i32) {
    %c0_i32 = arith.constant 0 : i32
    %c0_i32_0 = arith.constant 0 : i32
    %c0_i32_1 = arith.constant 0 : i32
    return %c0_i32, %c0_i32_0 : i32, i32
  }
  func.func @transform_3(%arg0: i32) -> (i32, i32) {
    %c0_i32 = arith.constant 0 : i32
    %c0_i32_0 = arith.constant 0 : i32
    %c0_i32_1 = arith.constant 0 : i32
    return %c0_i32, %c0_i32_0 : i32, i32
  }
  func.func @transform_4(%arg0: i32) -> (i32, i32) {
    %c0_i32 = arith.constant 0 : i32
    %c0_i32_0 = arith.constant 0 : i32
    %c0_i32_1 = arith.constant 0 : i32
    return %c0_i32, %c0_i32_0 : i32, i32
  }
  func.func @transform_5(%arg0: i32) -> (i32, i32) {
    %c0_i32 = arith.constant 0 : i32
    %c0_i32_0 = arith.constant 0 : i32
    return %arg0, %c0_i32 : i32, i32
  }
}

</mosaic_0001>

<llo_original>
// kernel: _lambda_.5
$region0: #{_lambda_.5}
  #allocation0 [shape = 'u32[]', space=smem, size = 0x4, offset = 0x4, fixed_abs, tag = 'smem constant byte address 0x4 - core index']
  #allocation1 [shape = 'u32[144,128]{1,0:T(1,128)}', space=vmem, size = 0x12000, scoped, tag = 'internal scratch']
  %s0 = inlined_call_operand.vmem [shape: bf16[128,8], index: 0, kind: input, shape index: {}]
  %s1 = inlined_call_operand.vmem [shape: bf16[128,8], index: 1, kind: input, shape index: {}]
  %s2 = inlined_call_operand.vmem [shape: bf16[8,16], index: 2, kind: input, shape index: {}]
  %s3 = inlined_call_operand.vmem [shape: bf16[8,16], index: 3, kind: input, shape index: {}]
  %s4 = inlined_call_operand.vmem [shape: f32[1,16], index: 4, kind: input, shape index: {}]
  %s5 = inlined_call_operand.vmem [shape: bf16[128,16], index: 5, kind: output, shape index: {}]
  %s6 = sld [smem:[#allocation0]]
  $region53: #{_lambda_.5} parent=0
    _
  %s8 = ssub.s32 1, %s6
  %s9 = scalar_select 0, %s8, %s6
  loop: start=0, step=1, limit=4
  $region2: #{_lambda_.5} parent=0 // loop_pre_header
    _
  $region3: #{_lambda_.5} parent=0 // loop_header
    %s11 = sphi 0, %s15
    %p12 = scmp.ge.s32.totalorder %s11, 4
    %s21 = sphi 0, %s23
    %s24 = sphi 0, %s21
    %s25 = sphi 0, %s24
    %s41 = sphi 0, %s25
    %s47 = sphi 0, %s49
    %s50 = sphi 0, %s47
    %s51 = sphi 0, %s50
    %s67 = sphi 0, %s51
    %s71 = sphi 0, %s71
    %s73 = sphi 0, %s71
    %s74 = sphi 0, %s73
    %s88 = sphi 0, %s74
    %s92 = sphi 0, %s92
    %s94 = sphi 0, %s92
    %s95 = sphi 0, %s94
    %s109 = sphi 0, %s95
    %s113 = sphi 0, %s113
    %s115 = sphi 0, %s113
    %s116 = sphi 0, %s115
    %s130 = sphi 0, %s116
    %s136 = sphi 0, %s138
    %s139 = sphi 0, %s136
    %s140 = sphi 0, %s139
    %s156 = sphi 0, %s140
  $region4: #{_lambda_.5} parent=0 // loop_header_branch
    %14 = sbr.rel (%p12) target = $region8
  $region5: #{_lambda_.5} parent=0 // loop_body
    %s16 = ssub.s32 %s11, 1
    %s17 = ssub.s32 %s11, 2
    %s18 = sadd.s32 %s11, 1
    %s19 = ssub.s32 %s11, %s18
    %p20 = scmp.eq.s32.totalorder %s19, 0
    %s22 = sadd.s32 %s21, 1
    %s23 = scalar_select %p20, %s21, %s22
    %p26 = pneg %p20
    %p27 = scmp.eq.s32.totalorder %s11, 1
    %p28 = por %p26, %p27
    %p29 = scmp.ne.s32.totalorder %s21, %s24
    %p30 = scmp.eq.s32.totalorder %s11, 0
    %p31 = por %p29, %p30
    %p32 = scmp.ne.s32.totalorder %s21, %s24
    %p33 = scmp.eq.s32.totalorder %s16, 1
    %p34 = por %p32, %p33
    %p35 = scmp.ne.s32.totalorder %s24, %s25
    %p36 = scmp.eq.s32.totalorder %s16, 0
    %p37 = por %p35, %p36
    %p38 = scmp.ne.s32.totalorder %s24, %s25
    %p39 = scmp.eq.s32.totalorder %s17, 1
    %p40 = por %p38, %p39
    %p42 = scmp.ne.s32.totalorder %s25, %s41
    %p43 = scmp.eq.s32.totalorder %s17, 0
    %p44 = por %p42, %p43
    %s45 = ssub.s32 %s11, %s18
    %p46 = scmp.eq.s32.totalorder %s45, 0
    %s48 = sadd.s32 %s47, 1
    %s49 = scalar_select %p46, %s47, %s48
    %p52 = pneg %p46
    %p53 = scmp.eq.s32.totalorder %s11, 1
    %p54 = por %p52, %p53
    %p55 = scmp.ne.s32.totalorder %s47, %s50
    %p56 = scmp.eq.s32.totalorder %s11, 0
    %p57 = por %p55, %p56
    %p58 = scmp.ne.s32.totalorder %s47, %s50
    %p59 = scmp.eq.s32.totalorder %s16, 1
    %p60 = por %p58, %p59
    %p61 = scmp.ne.s32.totalorder %s50, %s51
    %p62 = scmp.eq.s32.totalorder %s16, 0
    %p63 = por %p61, %p62
    %p64 = scmp.ne.s32.totalorder %s50, %s51
    %p65 = scmp.eq.s32.totalorder %s17, 1
    %p66 = por %p64, %p65
    %p68 = scmp.ne.s32.totalorder %s51, %s67
    %p69 = scmp.eq.s32.totalorder %s17, 0
    %p70 = por %p68, %p69
    %s72 = sadd.s32 %s71, 1
    %p75 = scmp.eq.s32.totalorder %s11, 1
    %p76 = scmp.ne.s32.totalorder %s71, %s73
    %p77 = scmp.eq.s32.totalorder %s11, 0
    %p78 = por %p76, %p77
    %p79 = scmp.ne.s32.totalorder %s71, %s73
    %p80 = scmp.eq.s32.totalorder %s16, 1
    %p81 = por %p79, %p80
    %p82 = scmp.ne.s32.totalorder %s73, %s74
    %p83 = scmp.eq.s32.totalorder %s16, 0
    %p84 = por %p82, %p83
    %p85 = scmp.ne.s32.totalorder %s73, %s74
    %p86 = scmp.eq.s32.totalorder %s17, 1
    %p87 = por %p85, %p86
    %p89 = scmp.ne.s32.totalorder %s74, %s88
    %p90 = scmp.eq.s32.totalorder %s17, 0
    %p91 = por %p89, %p90
    %s93 = sadd.s32 %s92, 1
    %p96 = scmp.eq.s32.totalorder %s11, 1
    %p97 = scmp.ne.s32.totalorder %s92, %s94
    %p98 = scmp.eq.s32.totalorder %s11, 0
    %p99 = por %p97, %p98
    %p100 = scmp.ne.s32.totalorder %s92, %s94
    %p101 = scmp.eq.s32.totalorder %s16, 1
    %p102 = por %p100, %p101
    %p103 = scmp.ne.s32.totalorder %s94, %s95
    %p104 = scmp.eq.s32.totalorder %s16, 0
    %p105 = por %p103, %p104
    %p106 = scmp.ne.s32.totalorder %s94, %s95
    %p107 = scmp.eq.s32.totalorder %s17, 1
    %p108 = por %p106, %p107
    %p110 = scmp.ne.s32.totalorder %s95, %s109
    %p111 = scmp.eq.s32.totalorder %s17, 0
    %p112 = por %p110, %p111
    %s114 = sadd.s32 %s113, 1
    %p117 = scmp.eq.s32.totalorder %s11, 1
    %p118 = scmp.ne.s32.totalorder %s113, %s115
    %p119 = scmp.eq.s32.totalorder %s11, 0
    %p120 = por %p118, %p119
    %p121 = scmp.ne.s32.totalorder %s113, %s115
    %p122 = scmp.eq.s32.totalorder %s16, 1
    %p123 = por %p121, %p122
    %p124 = scmp.ne.s32.totalorder %s115, %s116
    %p125 = scmp.eq.s32.totalorder %s16, 0
    %p126 = por %p124, %p125
    %p127 = scmp.ne.s32.totalorder %s115, %s116
    %p128 = scmp.eq.s32.totalorder %s17, 1
    %p129 = por %p127, %p128
    %p131 = scmp.ne.s32.totalorder %s116, %s130
    %p132 = scmp.eq.s32.totalorder %s17, 0
    %p133 = por %p131, %p132
    %s134 = ssub.s32 %s11, %s18
    %p135 = scmp.eq.s32.totalorder %s134, 0
    %s137 = sadd.s32 %s136, 1
    %s138 = scalar_select %p135, %s136, %s137
    %p141 = pneg %p135
    %p142 = scmp.eq.s32.totalorder %s11, 1
    %p143 = por %p141, %p142
    %p144 = scmp.ne.s32.totalorder %s136, %s139
    %p145 = scmp.eq.s32.totalorder %s11, 0
    %p146 = por %p144, %p145
    %p147 = scmp.ne.s32.totalorder %s136, %s139
    %p148 = scmp.eq.s32.totalorder %s16, 1
    %p149 = por %p147, %p148
    %p150 = scmp.ne.s32.totalorder %s139, %s140
    %p151 = scmp.eq.s32.totalorder %s16, 0
    %p152 = por %p150, %p151
    %p153 = scmp.ne.s32.totalorder %s139, %s140
    %p154 = scmp.eq.s32.totalorder %s17, 1
    %p155 = por %p153, %p154
    %p157 = scmp.ne.s32.totalorder %s140, %s156
    %p158 = scmp.eq.s32.totalorder %s17, 0
    %p159 = por %p157, %p158
    %p160 = scmp.le.s32.totalorder 1, %s11
    %p161 = scmp.lt.s32.totalorder %s11, 3
    %p162 = pnand %p160, %p161
    %p163 = pneg %p162
    // Predicated region
    $region9: #{_lambda_.5} parent=5 // pred_check
      _
    $region10: #{_lambda_.5} parent=5 // pred_check_branch
      %165 = sbr.rel (%p162) target = $region12
    $region11: #{_lambda_.5} parent=5 // pred_region
      %s166 = ssub.s32 %s11, 1
      // Predicated region
      $region13: #{_lambda_.5} parent=11 // pred_check
        %p167 = pneg %p84
      $region14: #{_lambda_.5} parent=11 // pred_check_branch
        %169 = sbr.rel (%p167) target = $region16
      $region15: #{_lambda_.5} parent=11 // pred_region
        _
      $region16: #{_lambda_.5} parent=11 // pred_fallthru
        _
      // Predicated region
      $region17: #{_lambda_.5} parent=11 // pred_check
        %p170 = pneg %p105
      $region18: #{_lambda_.5} parent=11 // pred_check_branch
        %172 = sbr.rel (%p170) target = $region20
      $region19: #{_lambda_.5} parent=11 // pred_region
        _
      $region20: #{_lambda_.5} parent=11 // pred_fallthru
        _
      // Predicated region
      $region21: #{_lambda_.5} parent=11 // pred_check
        %p173 = pneg %p126
      $region22: #{_lambda_.5} parent=11 // pred_check_branch
        %175 = sbr.rel (%p173) target = $region24
      $region23: #{_lambda_.5} parent=11 // pred_region
        _
      $region24: #{_lambda_.5} parent=11 // pred_fallthru
        _
    $region12: #{_lambda_.5} parent=5 // pred_fallthru
      _
    %p176 = scmp.lt.s32.totalorder %s11, 2
    // Predicated region
    $region25: #{_lambda_.5} parent=5 // pred_check
      %p177 = pneg %p176
    $region26: #{_lambda_.5} parent=5 // pred_check_branch
      %179 = sbr.rel (%p177) target = $region28
    $region27: #{_lambda_.5} parent=5 // pred_region
      // Predicated region
      $region29: #{_lambda_.5} parent=27 // pred_check
        %p180 = pneg %p31
      $region30: #{_lambda_.5} parent=27 // pred_check_branch
        %182 = sbr.rel (%p180) target = $region32
      $region31: #{_lambda_.5} parent=27 // pred_region
        %s183 = smul.u32 8, %s11
        %p184 = scmp.lt.s32.totalorder %s183, 15
        %s185 = scalar_select %p184, %s183, 15
        %s186 = smul.addr %s185, 4
        %s187 = scalar_lea.vmem %s0, %s186
        %s188 = smul.u32 8, %s11
      $region32: #{_lambda_.5} parent=27 // pred_fallthru
        _
      // Predicated region
      $region33: #{_lambda_.5} parent=27 // pred_check
        %p189 = pneg %p57
      $region34: #{_lambda_.5} parent=27 // pred_check_branch
        %191 = sbr.rel (%p189) target = $region36
      $region35: #{_lambda_.5} parent=27 // pred_region
        %s192 = smul.u32 8, %s11
        %p193 = scmp.lt.s32.totalorder %s192, 15
        %s194 = scalar_select %p193, %s192, 15
        %s195 = smul.addr %s194, 4
        %s196 = scalar_lea.vmem %s1, %s195
        %s197 = smul.u32 8, %s11
      $region36: #{_lambda_.5} parent=27 // pred_fallthru
        _
    $region28: #{_lambda_.5} parent=5 // pred_fallthru
      _
    %p198 = scmp.le.s32.totalorder 1, %s11
    %p199 = scmp.lt.s32.totalorder %s11, 3
    %p200 = pnand %p198, %p199
    %p201 = pneg %p200
    // Predicated region
    $region37: #{_lambda_.5} parent=5 // pred_check
      _
    $region38: #{_lambda_.5} parent=5 // pred_check_branch
      %203 = sbr.rel (%p200) target = $region40
    $region39: #{_lambda_.5} parent=5 // pred_region
      %s204 = ssub.s32 %s11, 1
      %s205 = smul.u32 8, %s16
      %p206 = scmp.lt.s32.totalorder %s205, 15
      %s207 = scalar_select %p206, %s205, 15
      %s208 = smul.addr %s207, 4
      %s209 = scalar_lea.vmem %s0, %s208
      %p210 = pneg %p37
      %p211 = pneg %p34
      %s212 = smul.u32 8, %s16
      %p213 = scmp.lt.s32.totalorder %s212, 15
      %s214 = scalar_select %p213, %s212, 15
      %s215 = smul.addr %s214, 4
      %s216 = scalar_lea.vmem %s1, %s215
      %p217 = pneg %p63
      %p218 = pneg %p60
      %p219 = pneg %p84
      %p220 = pneg %p81
      %p221 = pneg %p105
      %p222 = pneg %p102
      %p223 = pneg %p126
      %p224 = pneg %p123
      %p225 = pneg %p152
      %p226 = pneg %p149
      %s227 = smul.u32 8, %s16
      %p228 = scmp.lt.s32.totalorder %s227, 15
      %s229 = scalar_select %p228, %s227, 15
      %s230 = smul.addr %s229, 4
      %s231 = scalar_lea.vmem %s5, %s230
      %s232 = smul.u32 8, %s16
      %p233 = scmp.lt.s32.totalorder %s232, 15
      %s234 = scalar_select %p233, %s232, 15
      %s235 = smul.addr %s234, 4
      %s236 = scalar_lea.vmem %s0, %s235
      %s237 = smul.u32 8, %s16
      %s238 = smul.u32 8, %s16
      %p239 = scmp.lt.s32.totalorder %s238, 15
      %s240 = scalar_select %p239, %s238, 15
      %s241 = smul.addr %s240, 4
      %s242 = scalar_lea.vmem %s1, %s241
      %s243 = smul.u32 8, %s16
      %s244 = smul.u32 8, %s16
      %p245 = scmp.lt.s32.totalorder %s244, 15
      %s246 = scalar_select %p245, %s244, 15
      %s247 = smul.addr %s246, 4
      %s248 = scalar_lea.vmem %s5, %s247
      %s249 = smul.u32 8, %s16
      %v251 = vld [vmem:[%s236] sm:$0xf]
      %v252 = vld [vmem:[%s236 + $0x4] sm:$0xf]
      %v253 = vld [vmem:[%s236 + $0x8] sm:$0xf]
      %v254 = vld [vmem:[%s236 + $0xc] sm:$0xf]
      %v255 = vld [vmem:[%s236 + $0x10] sm:$0xf]
      %v256 = vld [vmem:[%s236 + $0x14] sm:$0xf]
      %v257 = vld [vmem:[%s236 + $0x18] sm:$0xf]
      %v258 = vld [vmem:[%s236 + $0x1c] sm:$0xf]
      %v259 = vld [vmem:[%s2] sm:$0xf]
      %v260 = vld [vmem:[%s242] sm:$0xf]
      %v261 = vld [vmem:[%s242 + $0x4] sm:$0xf]
      %v262 = vld [vmem:[%s242 + $0x8] sm:$0xf]
      %v263 = vld [vmem:[%s242 + $0xc] sm:$0xf]
      %v264 = vld [vmem:[%s242 + $0x10] sm:$0xf]
      %v265 = vld [vmem:[%s242 + $0x14] sm:$0xf]
      %v266 = vld [vmem:[%s242 + $0x18] sm:$0xf]
      %v267 = vld [vmem:[%s242 + $0x1c] sm:$0xf]
      %v268 = vld [vmem:[%s3] sm:$0xf]
      %v277 = vunpack.c.l.b16 %v260
      %v278 = vunpack.c.l.b16 %v261
      %v279 = vunpack.c.l.b16 %v262
      %v280 = vunpack.c.l.b16 %v263
      %v281 = vunpack.c.l.b16 %v264
      %v282 = vunpack.c.l.b16 %v265
      %v283 = vunpack.c.l.b16 %v266
      %v284 = vunpack.c.l.b16 %v267
      %v285 = vpack.c.b16 %v278, %v277
      %v286 = vpack.c.b16 %v280, %v279
      %v287 = vpack.c.b16 %v282, %v281
      %v288 = vpack.c.b16 %v284, %v283
      %vm289 = vcmask 64512
      %v291 = vsel %vm289, %v285, 0
      %v294 = vsel %vm289, %v286, 0
      %v297 = vsel %vm289, %v287, 0
      %v300 = vsel %vm289, %v288, 0
      %vm302 = vcmask 1043456
      %v304 = vsel %vm302, %v268, 0
      %306 = vmatprep.subr.bf16.mxu0 0
      %307 = vmatpush1.bf16.msra.mxu0 %v304
      %308 = vmatprep.subr.bf16.mxu0 0
      %309 = vmatpush1.bf16.msra.mxu0 0
      %310 = vmatprep.subr.bf16.mxu0 0
      %311 = vmatpush1.bf16.msra.mxu0 0
      %312 = vmatprep.subr.bf16.mxu0 0
      %313 = vmatpush1.bf16.msra.mxu0 0
      %314 = vmatprep.subr.bf16.mxu0 0
      %315 = vmatpush1.bf16.msra.mxu0 0
      %316 = vmatprep.subr.bf16.mxu0 0
      %317 = vmatpush1.bf16.msra.mxu0 0
      %318 = vmatprep.subr.bf16.mxu0 0
      %319 = vmatpush1.bf16.msra.mxu0 0
      %320 = vmatprep.subr.bf16.mxu0 0
      %321 = vmatpush1.bf16.msra.mxu0 0
      %322 = vmatprep.subr.bf16.mxu0 0
      %323 = vmatpush1.bf16.msra.mxu0 0
      %324 = vmatprep.subr.bf16.mxu0 0
      %325 = vmatpush1.bf16.msra.mxu0 0
      %326 = vmatprep.subr.bf16.mxu0 0
      %327 = vmatpush1.bf16.msra.mxu0 0
      %328 = vmatprep.subr.bf16.mxu0 0
      %329 = vmatpush1.bf16.msra.mxu0 0
      %330 = vmatprep.subr.bf16.mxu0 0
      %331 = vmatpush1.bf16.msra.mxu0 0
      %332 = vmatprep.subr.bf16.mxu0 0
      %333 = vmatpush1.bf16.msra.mxu0 0
      %334 = vmatprep.subr.bf16.mxu0 0
      %335 = vmatpush1.bf16.msra.mxu0 0
      %336 = vmatprep.subr.bf16.mxu0 0
      %337 = vmatpush1.bf16.msra.mxu0 0
      %338 = vmatprep.mubr.bf16.mxu0 0
      %339 = vmatmul.mubr.bf16.gmra.mrb[0].mxu0 %v291
      %v340 = vpop.f32.mrb[0].mxu0
      %v341 = vadd.f32 0.0, %v340
      %v342 = vpop.f32.mrb[0].mxu0
      %v343 = vpop.f32.mrb[0].mxu0
      %v344 = vadd.f32 0.0, %v343
      %v345 = vpop.f32.mrb[0].mxu0
      %346 = vmatprep.mubr.bf16.mxu0 0
      %347 = vmatmul.mubr.bf16.gmra.mrb[0].mxu0 %v294
      %v348 = vpop.f32.mrb[0].mxu0
      %v349 = vadd.f32 0.0, %v348
      %v350 = vpop.f32.mrb[0].mxu0
      %v351 = vpop.f32.mrb[0].mxu0
      %v352 = vadd.f32 0.0, %v351
      %v353 = vpop.f32.mrb[0].mxu0
      %354 = vmatprep.mubr.bf16.mxu0 0
      %355 = vmatmul.mubr.bf16.gmra.mrb[0].mxu0 %v297
      %v356 = vpop.f32.mrb[0].mxu0
      %v357 = vadd.f32 0.0, %v356
      %v358 = vpop.f32.mrb[0].mxu0
      %v359 = vpop.f32.mrb[0].mxu0
      %v360 = vadd.f32 0.0, %v359
      %v361 = vpop.f32.mrb[0].mxu0
      %362 = vmatprep.mubr.bf16.mxu0 0
      %363 = vmatmul.mubr.bf16.gmra.mrb[0].mxu0 %v300
      %v364 = vpop.f32.mrb[0].mxu0
      %v365 = vadd.f32 0.0, %v364
      %v366 = vpop.f32.mrb[0].mxu0
      %v367 = vpop.f32.mrb[0].mxu0
      %v368 = vadd.f32 0.0, %v367
      %v369 = vpop.f32.mrb[0].mxu0
      %370 = vdwg.mxu0
      %v379 = vunpack.c.l.b16 %v251
      %v380 = vunpack.c.l.b16 %v252
      %v381 = vunpack.c.l.b16 %v253
      %v382 = vunpack.c.l.b16 %v254
      %v383 = vunpack.c.l.b16 %v255
      %v384 = vunpack.c.l.b16 %v256
      %v385 = vunpack.c.l.b16 %v257
      %v386 = vunpack.c.l.b16 %v258
      %v387 = vpack.c.b16 %v380, %v379
      %v388 = vpack.c.b16 %v382, %v381
      %v389 = vpack.c.b16 %v384, %v383
      %v390 = vpack.c.b16 %v386, %v385
      %v392 = vsel %vm289, %v387, 0
      %v395 = vsel %vm289, %v388, 0
      %v398 = vsel %vm289, %v389, 0
      %v401 = vsel %vm289, %v390, 0
      %v404 = vsel %vm302, %v259, 0
      %406 = vmatprep.subr.bf16.mxu0 0
      %407 = vmatpush1.bf16.msra.mxu0 %v404
      %408 = vmatprep.subr.bf16.mxu0 0
      %409 = vmatpush1.bf16.msra.mxu0 0
      %410 = vmatprep.subr.bf16.mxu0 0
      %411 = vmatpush1.bf16.msra.mxu0 0
      %412 = vmatprep.subr.bf16.mxu0 0
      %413 = vmatpush1.bf16.msra.mxu0 0
      %414 = vmatprep.subr.bf16.mxu0 0
      %415 = vmatpush1.bf16.msra.mxu0 0
      %416 = vmatprep.subr.bf16.mxu0 0
      %417 = vmatpush1.bf16.msra.mxu0 0
      %418 = vmatprep.subr.bf16.mxu0 0
      %419 = vmatpush1.bf16.msra.mxu0 0
      %420 = vmatprep.subr.bf16.mxu0 0
      %421 = vmatpush1.bf16.msra.mxu0 0
      %422 = vmatprep.subr.bf16.mxu0 0
      %423 = vmatpush1.bf16.msra.mxu0 0
      %424 = vmatprep.subr.bf16.mxu0 0
      %425 = vmatpush1.bf16.msra.mxu0 0
      %426 = vmatprep.subr.bf16.mxu0 0
      %427 = vmatpush1.bf16.msra.mxu0 0
      %428 = vmatprep.subr.bf16.mxu0 0
      %429 = vmatpush1.bf16.msra.mxu0 0
      %430 = vmatprep.subr.bf16.mxu0 0
      %431 = vmatpush1.bf16.msra.mxu0 0
      %432 = vmatprep.subr.bf16.mxu0 0
      %433 = vmatpush1.bf16.msra.mxu0 0
      %434 = vmatprep.subr.bf16.mxu0 0
      %435 = vmatpush1.bf16.msra.mxu0 0
      %436 = vmatprep.subr.bf16.mxu0 0
      %437 = vmatpush1.bf16.msra.mxu0 0
      %438 = vmatprep.mubr.bf16.mxu0 0
      %439 = vmatmul.mubr.bf16.gmra.mrb[0].mxu0 %v392
      %v440 = vpop.f32.mrb[0].mxu0
      %v441 = vadd.f32 %v341, %v440
      %v442 = vpop.f32.mrb[0].mxu0
      %v443 = vpop.f32.mrb[0].mxu0
      %v444 = vadd.f32 %v344, %v443
      %v445 = vpop.f32.mrb[0].mxu0
      %446 = vmatprep.mubr.bf16.mxu0 0
      %447 = vmatmul.mubr.bf16.gmra.mrb[0].mxu0 %v395
      %v448 = vpop.f32.mrb[0].mxu0
      %v449 = vadd.f32 %v349, %v448
      %v450 = vpop.f32.mrb[0].mxu0
      %v451 = vpop.f32.mrb[0].mxu0
      %v452 = vadd.f32 %v352, %v451
      %v453 = vpop.f32.mrb[0].mxu0
      %454 = vmatprep.mubr.bf16.mxu0 0
      %455 = vmatmul.mubr.bf16.gmra.mrb[0].mxu0 %v398
      %v456 = vpop.f32.mrb[0].mxu0
      %v457 = vadd.f32 %v357, %v456
      %v458 = vpop.f32.mrb[0].mxu0
      %v459 = vpop.f32.mrb[0].mxu0
      %v460 = vadd.f32 %v360, %v459
      %v461 = vpop.f32.mrb[0].mxu0
      %462 = vmatprep.mubr.bf16.mxu0 0
      %463 = vmatmul.mubr.bf16.gmra.mrb[0].mxu0 %v401
      %v464 = vpop.f32.mrb[0].mxu0
      %v465 = vadd.f32 %v365, %v464
      %v466 = vpop.f32.mrb[0].mxu0
      %v467 = vpop.f32.mrb[0].mxu0
      %v468 = vadd.f32 %v368, %v467
      %v469 = vpop.f32.mrb[0].mxu0
      %470 = vdwg.mxu0
      %v471 = vld [vmem:[%s4] sm:$0x1]
      %v473 = vlaneseq
      %v474 = vshrl.u32 %v473, 7
      %v475 = vsub.s32 0, %v474
      %v476 = vrot.slane %v471, %v475
      %v478 = vadd.f32 %v441, %v476
      %v479 = vadd.f32 %v444, %v476
      %v480 = vadd.f32 %v449, %v476
      %v481 = vadd.f32 %v452, %v476
      %v482 = vadd.f32 %v457, %v476
      %v483 = vadd.f32 %v460, %v476
      %v484 = vadd.f32 %v465, %v476
      %v485 = vadd.f32 %v468, %v476
      %v486 = vxor.u32 %v478, 2147483648
      %v487 = vxor.u32 %v479, 2147483648
      %v488 = vxor.u32 %v480, 2147483648
      %v489 = vxor.u32 %v481, 2147483648
      %v490 = vxor.u32 %v482, 2147483648
      %v491 = vxor.u32 %v483, 2147483648
      %v492 = vxor.u32 %v484, 2147483648
      %v493 = vxor.u32 %v485, 2147483648
      %v494 = vmul.f32 %v486, 1.442695
      %v495 = vpow.pop %v494
      %v496 = vmul.f32 %v487, 1.442695
      %v497 = vpow.pop %v496
      %v498 = vmul.f32 %v488, 1.442695
      %v499 = vpow.pop %v498
      %v500 = vmul.f32 %v489, 1.442695
      %v501 = vpow.pop %v500
      %v502 = vmul.f32 %v490, 1.442695
      %v503 = vpow.pop %v502
      %v504 = vmul.f32 %v491, 1.442695
      %v505 = vpow.pop %v504
      %v506 = vmul.f32 %v492, 1.442695
      %v507 = vpow.pop %v506
      %v508 = vmul.f32 %v493, 1.442695
      %v509 = vpow.pop %v508
      %v510 = vadd.f32 %v495, 1.0
      %v511 = vadd.f32 %v497, 1.0
      %v512 = vadd.f32 %v499, 1.0
      %v513 = vadd.f32 %v501, 1.0
      %v514 = vadd.f32 %v503, 1.0
      %v515 = vadd.f32 %v505, 1.0
      %v516 = vadd.f32 %v507, 1.0
      %v517 = vadd.f32 %v509, 1.0
      %v518 = vrcp.pop %v510
      %v519 = vmul.f32 1.0, %v518
      %v520 = vrcp.pop %v511
      %v521 = vmul.f32 1.0, %v520
      %v522 = vrcp.pop %v512
      %v523 = vmul.f32 1.0, %v522
      %v524 = vrcp.pop %v513
      %v525 = vmul.f32 1.0, %v524
      %v526 = vrcp.pop %v514
      %v527 = vmul.f32 1.0, %v526
      %v528 = vrcp.pop %v515
      %v529 = vmul.f32 1.0, %v528
      %v530 = vrcp.pop %v516
      %v531 = vmul.f32 1.0, %v530
      %v532 = vrcp.pop %v517
      %v533 = vmul.f32 1.0, %v532
      %v534 = vmul.f32 %v478, %v519
      %v535 = vmul.f32 %v479, %v521
      %v536 = vmul.f32 %v480, %v523
      %v537 = vmul.f32 %v481, %v525
      %v538 = vmul.f32 %v482, %v527
      %v539 = vmul.f32 %v483, %v529
      %v540 = vmul.f32 %v484, %v531
      %v541 = vmul.f32 %v485, %v533
      %v542 = vpack.c.bf16 %v535, %v534
      %v543 = vpack.c.bf16 %v537, %v536
      %v544 = vpack.c.bf16 %v539, %v538
      %v545 = vpack.c.bf16 %v541, %v540
      %v550 = vunpack.c.l.b16 %v542
      %v551 = vunpack.c.h.b16 %v542
      %v552 = vunpack.c.l.b16 %v543
      %v553 = vunpack.c.h.b16 %v543
      %v554 = vunpack.c.l.b16 %v544
      %v555 = vunpack.c.h.b16 %v544
      %v556 = vunpack.c.l.b16 %v545
      %v557 = vunpack.c.h.b16 %v545
      %v558 = vpack.c.b16 %v550, %v550
      %v559 = vpack.c.b16 %v551, %v551
      %v560 = vpack.c.b16 %v552, %v552
      %v561 = vpack.c.b16 %v553, %v553
      %v562 = vpack.c.b16 %v554, %v554
      %v563 = vpack.c.b16 %v555, %v555
      %v564 = vpack.c.b16 %v556, %v556
      %v565 = vpack.c.b16 %v557, %v557
      %vm574 = vcmask 125952
      %575 = vst.msk [vmem:[%s248] sm:$0xf] %vm574, %v558
      %576 = vst.msk [vmem:[%s248 + $0x4] sm:$0xf] %vm574, %v559
      %577 = vst.msk [vmem:[%s248 + $0x8] sm:$0xf] %vm574, %v560
      %578 = vst.msk [vmem:[%s248 + $0xc] sm:$0xf] %vm574, %v561
      %579 = vst.msk [vmem:[%s248 + $0x10] sm:$0xf] %vm574, %v562
      %580 = vst.msk [vmem:[%s248 + $0x14] sm:$0xf] %vm574, %v563
      %581 = vst.msk [vmem:[%s248 + $0x18] sm:$0xf] %vm574, %v564
      %582 = vst.msk [vmem:[%s248 + $0x1c] sm:$0xf] %vm574, %v565
      %s583 = smul.u32 8, %s16
      %p584 = scmp.lt.s32.totalorder %s583, 15
      %s585 = scalar_select %p584, %s583, 15
      %s586 = smul.addr %s585, 4
      %s587 = scalar_lea.vmem %s5, %s586
      // Predicated region
      $region41: #{_lambda_.5} parent=39 // pred_check
        %p588 = pneg %p149
      $region42: #{_lambda_.5} parent=39 // pred_check_branch
        %590 = sbr.rel (%p588) target = $region44
      $region43: #{_lambda_.5} parent=39 // pred_region
        %s591 = smul.u32 8, %s16
      $region44: #{_lambda_.5} parent=39 // pred_fallthru
        _
    $region40: #{_lambda_.5} parent=5 // pred_fallthru
      _
    %p592 = scmp.le.s32.totalorder 2, %s11
    // Predicated region
    $region45: #{_lambda_.5} parent=5 // pred_check
      %p593 = pneg %p592
    $region46: #{_lambda_.5} parent=5 // pred_check_branch
      %595 = sbr.rel (%p593) target = $region48
    $region47: #{_lambda_.5} parent=5 // pred_region
      %s596 = ssub.s32 %s11, 2
      // Predicated region
      $region49: #{_lambda_.5} parent=47 // pred_check
        %p597 = pneg %p155
      $region50: #{_lambda_.5} parent=47 // pred_check_branch
        %599 = sbr.rel (%p597) target = $region52
      $region51: #{_lambda_.5} parent=47 // pred_region
        %s600 = smul.u32 8, %s17
        %p601 = scmp.lt.s32.totalorder %s600, 15
        %s602 = scalar_select %p601, %s600, 15
        %s603 = smul.addr %s602, 4
        %s604 = scalar_lea.vmem %s5, %s603
      $region52: #{_lambda_.5} parent=47 // pred_fallthru
        _
    $region48: #{_lambda_.5} parent=5 // pred_fallthru
      _
  $region6: #{_lambda_.5} parent=0 // loop_footer
    %s15 = sadd.s32 1, %s11
  $region7: #{_lambda_.5} parent=0 // loop_footer_branch
    %10 = sbr.rel target = $region3
  $region8: #{_lambda_.5} parent=0 // loop_exit
    _

// kernel: _lambda_.3
$region0: #{_lambda_.3}
  #allocation0 [shape = 'u32[]', space=smem, size = 0x4, offset = 0x4, fixed_abs, tag = 'smem constant byte address 0x4 - core index']
  #allocation1 [shape = 'u32[144,128]{1,0:T(1,128)}', space=vmem, size = 0x12000, scoped, tag = 'internal scratch']
  %s0 = inlined_call_operand.vmem [shape: bf16[128,16], index: 0, kind: input, shape index: {}]
  %s1 = inlined_call_operand.vmem [shape: bf16[16,16], index: 1, kind: input, shape index: {}]
  %s2 = inlined_call_operand.vmem [shape: f32[1,16], index: 2, kind: input, shape index: {}]
  %s3 = inlined_call_operand.vmem [shape: bf16[128,8], index: 3, kind: output, shape index: {0}]
  %s4 = inlined_call_operand.vmem [shape: bf16[128,8], index: 4, kind: output, shape index: {1}]
  %5 = xla_tuple %s3, %s4
  %s6 = sld [smem:[#allocation0]]
  $region53: #{_lambda_.3} parent=0
    _
  %s8 = ssub.s32 1, %s6
  %s9 = scalar_select 0, %s8, %s6
  loop: start=0, step=1, limit=4
  $region2: #{_lambda_.3} parent=0 // loop_pre_header
    _
  $region3: #{_lambda_.3} parent=0 // loop_header
    %s11 = sphi 0, %s15
    %p12 = scmp.ge.s32.totalorder %s11, 4
    %s21 = sphi 0, %s23
    %s24 = sphi 0, %s21
    %s25 = sphi 0, %s24
    %s41 = sphi 0, %s25
    %s45 = sphi 0, %s45
    %s47 = sphi 0, %s45
    %s48 = sphi 0, %s47
    %s62 = sphi 0, %s48
    %s66 = sphi 0, %s66
    %s68 = sphi 0, %s66
    %s69 = sphi 0, %s68
    %s83 = sphi 0, %s69
    %s89 = sphi 0, %s91
    %s92 = sphi 0, %s89
    %s93 = sphi 0, %s92
    %s109 = sphi 0, %s93
    %s115 = sphi 0, %s117
    %s118 = sphi 0, %s115
    %s119 = sphi 0, %s118
    %s135 = sphi 0, %s119
  $region4: #{_lambda_.3} parent=0 // loop_header_branch
    %14 = sbr.rel (%p12) target = $region8
  $region5: #{_lambda_.3} parent=0 // loop_body
    %s16 = ssub.s32 %s11, 1
    %s17 = ssub.s32 %s11, 2
    %s18 = sadd.s32 %s11, 1
    %s19 = ssub.s32 %s11, %s18
    %p20 = scmp.eq.s32.totalorder %s19, 0
    %s22 = sadd.s32 %s21, 1
    %s23 = scalar_select %p20, %s21, %s22
    %p26 = pneg %p20
    %p27 = scmp.eq.s32.totalorder %s11, 1
    %p28 = por %p26, %p27
    %p29 = scmp.ne.s32.totalorder %s21, %s24
    %p30 = scmp.eq.s32.totalorder %s11, 0
    %p31 = por %p29, %p30
    %p32 = scmp.ne.s32.totalorder %s21, %s24
    %p33 = scmp.eq.s32.totalorder %s16, 1
    %p34 = por %p32, %p33
    %p35 = scmp.ne.s32.totalorder %s24, %s25
    %p36 = scmp.eq.s32.totalorder %s16, 0
    %p37 = por %p35, %p36
    %p38 = scmp.ne.s32.totalorder %s24, %s25
    %p39 = scmp.eq.s32.totalorder %s17, 1
    %p40 = por %p38, %p39
    %p42 = scmp.ne.s32.totalorder %s25, %s41
    %p43 = scmp.eq.s32.totalorder %s17, 0
    %p44 = por %p42, %p43
    %s46 = sadd.s32 %s45, 1
    %p49 = scmp.eq.s32.totalorder %s11, 1
    %p50 = scmp.ne.s32.totalorder %s45, %s47
    %p51 = scmp.eq.s32.totalorder %s11, 0
    %p52 = por %p50, %p51
    %p53 = scmp.ne.s32.totalorder %s45, %s47
    %p54 = scmp.eq.s32.totalorder %s16, 1
    %p55 = por %p53, %p54
    %p56 = scmp.ne.s32.totalorder %s47, %s48
    %p57 = scmp.eq.s32.totalorder %s16, 0
    %p58 = por %p56, %p57
    %p59 = scmp.ne.s32.totalorder %s47, %s48
    %p60 = scmp.eq.s32.totalorder %s17, 1
    %p61 = por %p59, %p60
    %p63 = scmp.ne.s32.totalorder %s48, %s62
    %p64 = scmp.eq.s32.totalorder %s17, 0
    %p65 = por %p63, %p64
    %s67 = sadd.s32 %s66, 1
    %p70 = scmp.eq.s32.totalorder %s11, 1
    %p71 = scmp.ne.s32.totalorder %s66, %s68
    %p72 = scmp.eq.s32.totalorder %s11, 0
    %p73 = por %p71, %p72
    %p74 = scmp.ne.s32.totalorder %s66, %s68
    %p75 = scmp.eq.s32.totalorder %s16, 1
    %p76 = por %p74, %p75
    %p77 = scmp.ne.s32.totalorder %s68, %s69
    %p78 = scmp.eq.s32.totalorder %s16, 0
    %p79 = por %p77, %p78
    %p80 = scmp.ne.s32.totalorder %s68, %s69
    %p81 = scmp.eq.s32.totalorder %s17, 1
    %p82 = por %p80, %p81
    %p84 = scmp.ne.s32.totalorder %s69, %s83
    %p85 = scmp.eq.s32.totalorder %s17, 0
    %p86 = por %p84, %p85
    %s87 = ssub.s32 %s11, %s18
    %p88 = scmp.eq.s32.totalorder %s87, 0
    %s90 = sadd.s32 %s89, 1
    %s91 = scalar_select %p88, %s89, %s90
    %p94 = pneg %p88
    %p95 = scmp.eq.s32.totalorder %s11, 1
    %p96 = por %p94, %p95
    %p97 = scmp.ne.s32.totalorder %s89, %s92
    %p98 = scmp.eq.s32.totalorder %s11, 0
    %p99 = por %p97, %p98
    %p100 = scmp.ne.s32.totalorder %s89, %s92
    %p101 = scmp.eq.s32.totalorder %s16, 1
    %p102 = por %p100, %p101
    %p103 = scmp.ne.s32.totalorder %s92, %s93
    %p104 = scmp.eq.s32.totalorder %s16, 0
    %p105 = por %p103, %p104
    %p106 = scmp.ne.s32.totalorder %s92, %s93
    %p107 = scmp.eq.s32.totalorder %s17, 1
    %p108 = por %p106, %p107
    %p110 = scmp.ne.s32.totalorder %s93, %s109
    %p111 = scmp.eq.s32.totalorder %s17, 0
    %p112 = por %p110, %p111
    %s113 = ssub.s32 %s11, %s18
    %p114 = scmp.eq.s32.totalorder %s113, 0
    %s116 = sadd.s32 %s115, 1
    %s117 = scalar_select %p114, %s115, %s116
    %p120 = pneg %p114
    %p121 = scmp.eq.s32.totalorder %s11, 1
    %p122 = por %p120, %p121
    %p123 = scmp.ne.s32.totalorder %s115, %s118
    %p124 = scmp.eq.s32.totalorder %s11, 0
    %p125 = por %p123, %p124
    %p126 = scmp.ne.s32.totalorder %s115, %s118
    %p127 = scmp.eq.s32.totalorder %s16, 1
    %p128 = por %p126, %p127
    %p129 = scmp.ne.s32.totalorder %s118, %s119
    %p130 = scmp.eq.s32.totalorder %s16, 0
    %p131 = por %p129, %p130
    %p132 = scmp.ne.s32.totalorder %s118, %s119
    %p133 = scmp.eq.s32.totalorder %s17, 1
    %p134 = por %p132, %p133
    %p136 = scmp.ne.s32.totalorder %s119, %s135
    %p137 = scmp.eq.s32.totalorder %s17, 0
    %p138 = por %p136, %p137
    %p139 = scmp.le.s32.totalorder 1, %s11
    %p140 = scmp.lt.s32.totalorder %s11, 3
    %p141 = pnand %p139, %p140
    %p142 = pneg %p141
    // Predicated region
    $region9: #{_lambda_.3} parent=5 // pred_check
      _
    $region10: #{_lambda_.3} parent=5 // pred_check_branch
      %144 = sbr.rel (%p141) target = $region12
    $region11: #{_lambda_.3} parent=5 // pred_region
      %s145 = ssub.s32 %s11, 1
      // Predicated region
      $region13: #{_lambda_.3} parent=11 // pred_check
        %p146 = pneg %p58
      $region14: #{_lambda_.3} parent=11 // pred_check_branch
        %148 = sbr.rel (%p146) target = $region16
      $region15: #{_lambda_.3} parent=11 // pred_region
        _
      $region16: #{_lambda_.3} parent=11 // pred_fallthru
        _
      // Predicated region
      $region17: #{_lambda_.3} parent=11 // pred_check
        %p149 = pneg %p79
      $region18: #{_lambda_.3} parent=11 // pred_check_branch
        %151 = sbr.rel (%p149) target = $region20
      $region19: #{_lambda_.3} parent=11 // pred_region
        _
      $region20: #{_lambda_.3} parent=11 // pred_fallthru
        _
    $region12: #{_lambda_.3} parent=5 // pred_fallthru
      _
    %p152 = scmp.lt.s32.totalorder %s11, 2
    // Predicated region
    $region21: #{_lambda_.3} parent=5 // pred_check
      %p153 = pneg %p152
    $region22: #{_lambda_.3} parent=5 // pred_check_branch
      %155 = sbr.rel (%p153) target = $region24
    $region23: #{_lambda_.3} parent=5 // pred_region
      // Predicated region
      $region25: #{_lambda_.3} parent=23 // pred_check
        %p156 = pneg %p31
      $region26: #{_lambda_.3} parent=23 // pred_check_branch
        %158 = sbr.rel (%p156) target = $region28
      $region27: #{_lambda_.3} parent=23 // pred_region
        %s159 = smul.u32 8, %s11
        %p160 = scmp.lt.s32.totalorder %s159, 15
        %s161 = scalar_select %p160, %s159, 15
        %s162 = smul.addr %s161, 4
        %s163 = scalar_lea.vmem %s0, %s162
        %s164 = smul.u32 8, %s11
      $region28: #{_lambda_.3} parent=23 // pred_fallthru
        _
    $region24: #{_lambda_.3} parent=5 // pred_fallthru
      _
    %p165 = scmp.le.s32.totalorder 1, %s11
    %p166 = scmp.lt.s32.totalorder %s11, 3
    %p167 = pnand %p165, %p166
    %p168 = pneg %p167
    // Predicated region
    $region29: #{_lambda_.3} parent=5 // pred_check
      _
    $region30: #{_lambda_.3} parent=5 // pred_check_branch
      %170 = sbr.rel (%p167) target = $region32
    $region31: #{_lambda_.3} parent=5 // pred_region
      %s171 = ssub.s32 %s11, 1
      %s172 = smul.u32 8, %s16
      %p173 = scmp.lt.s32.totalorder %s172, 15
      %s174 = scalar_select %p173, %s172, 15
      %s175 = smul.addr %s174, 4
      %s176 = scalar_lea.vmem %s0, %s175
      %p177 = pneg %p37
      %p178 = pneg %p34
      %p179 = pneg %p58
      %p180 = pneg %p55
      %p181 = pneg %p79
      %p182 = pneg %p76
      %p183 = pneg %p105
      %p184 = pneg %p102
      %s185 = smul.u32 8, %s16
      %p186 = scmp.lt.s32.totalorder %s185, 15
      %s187 = scalar_select %p186, %s185, 15
      %s188 = smul.addr %s187, 4
      %s189 = scalar_lea.vmem %s3, %s188
      %p190 = pneg %p131
      %p191 = pneg %p128
      %s192 = smul.u32 8, %s16
      %p193 = scmp.lt.s32.totalorder %s192, 15
      %s194 = scalar_select %p193, %s192, 15
      %s195 = smul.addr %s194, 4
      %s196 = scalar_lea.vmem %s4, %s195
      %s197 = smul.u32 8, %s16
      %p198 = scmp.lt.s32.totalorder %s197, 15
      %s199 = scalar_select %p198, %s197, 15
      %s200 = smul.addr %s199, 4
      %s201 = scalar_lea.vmem %s0, %s200
      %s202 = smul.u32 8, %s16
      %s203 = smul.u32 8, %s16
      %p204 = scmp.lt.s32.totalorder %s203, 15
      %s205 = scalar_select %p204, %s203, 15
      %s206 = smul.addr %s205, 4
      %s207 = scalar_lea.vmem %s3, %s206
      %s208 = smul.u32 8, %s16
      %s209 = smul.u32 8, %s16
      %p210 = scmp.lt.s32.totalorder %s209, 15
      %s211 = scalar_select %p210, %s209, 15
      %s212 = smul.addr %s211, 4
      %s213 = scalar_lea.vmem %s4, %s212
      %s214 = smul.u32 8, %s16
      %v216 = vld [vmem:[%s201] sm:$0xf]
      %v217 = vld [vmem:[%s201 + $0x4] sm:$0xf]
      %v218 = vld [vmem:[%s201 + $0x8] sm:$0xf]
      %v219 = vld [vmem:[%s201 + $0xc] sm:$0xf]
      %v220 = vld [vmem:[%s201 + $0x10] sm:$0xf]
      %v221 = vld [vmem:[%s201 + $0x14] sm:$0xf]
      %v222 = vld [vmem:[%s201 + $0x18] sm:$0xf]
      %v223 = vld [vmem:[%s201 + $0x1c] sm:$0xf]
      %v224 = vld [vmem:[%s1] sm:$0xf]
      %v225 = vld [vmem:[%s1 + $0x4] sm:$0xf]
      %v226 = vld [vmem:[%s2] sm:$0x1]
      %v228 = vlaneseq
      %v229 = vshrl.u32 %v228, 7
      %v230 = vsub.s32 0, %v229
      %v231 = vrot.slane %v226, %v230
      %v241 = vunpack.c.l.b16 %v216
      %v242 = vunpack.c.l.b16 %v217
      %v243 = vunpack.c.l.b16 %v218
      %v244 = vunpack.c.l.b16 %v219
      %v245 = vunpack.c.l.b16 %v220
      %v246 = vunpack.c.l.b16 %v221
      %v247 = vunpack.c.l.b16 %v222
      %v248 = vunpack.c.l.b16 %v223
      %v249 = vpack.c.b16 %v242, %v241
      %v250 = vpack.c.b16 %v244, %v243
      %v251 = vpack.c.b16 %v246, %v245
      %v252 = vpack.c.b16 %v248, %v247
      %v255 = vunpack.c.l.b16 %v224
      %v256 = vunpack.c.l.b16 %v225
      %v257 = vpack.c.b16 %v256, %v255
      %vm259 = vcmask 130048
      %v261 = vsel %vm259, %v249, 0
      %v264 = vsel %vm259, %v250, 0
      %v267 = vsel %vm259, %v251, 0
      %v270 = vsel %vm259, %v252, 0
      %272 = vmatprep.subr.bf16.mxu0 0
      %273 = vmatpush1.bf16.msra.mxu0 %v257
      %274 = vmatprep.subr.bf16.mxu0 0
      %275 = vmatpush1.bf16.msra.mxu0 0
      %276 = vmatprep.subr.bf16.mxu0 0
      %277 = vmatpush1.bf16.msra.mxu0 0
      %278 = vmatprep.subr.bf16.mxu0 0
      %279 = vmatpush1.bf16.msra.mxu0 0
      %280 = vmatprep.subr.bf16.mxu0 0
      %281 = vmatpush1.bf16.msra.mxu0 0
      %282 = vmatprep.subr.bf16.mxu0 0
      %283 = vmatpush1.bf16.msra.mxu0 0
      %284 = vmatprep.subr.bf16.mxu0 0
      %285 = vmatpush1.bf16.msra.mxu0 0
      %286 = vmatprep.subr.bf16.mxu0 0
      %287 = vmatpush1.bf16.msra.mxu0 0
      %288 = vmatprep.subr.bf16.mxu0 0
      %289 = vmatpush1.bf16.msra.mxu0 0
      %290 = vmatprep.subr.bf16.mxu0 0
      %291 = vmatpush1.bf16.msra.mxu0 0
      %292 = vmatprep.subr.bf16.mxu0 0
      %293 = vmatpush1.bf16.msra.mxu0 0
      %294 = vmatprep.subr.bf16.mxu0 0
      %295 = vmatpush1.bf16.msra.mxu0 0
      %296 = vmatprep.subr.bf16.mxu0 0
      %297 = vmatpush1.bf16.msra.mxu0 0
      %298 = vmatprep.subr.bf16.mxu0 0
      %299 = vmatpush1.bf16.msra.mxu0 0
      %300 = vmatprep.subr.bf16.mxu0 0
      %301 = vmatpush1.bf16.msra.mxu0 0
      %302 = vmatprep.subr.bf16.mxu0 0
      %303 = vmatpush1.bf16.msra.mxu0 0
      %304 = vmatprep.mubr.bf16.mxu0 0
      %305 = vmatmul.mubr.bf16.gmra.mrb[0].mxu0 %v261
      %v306 = vpop.f32.mrb[0].mxu0
      %v307 = vadd.f32 %v231, %v306
      %v308 = vpop.f32.mrb[0].mxu0
      %v309 = vpop.f32.mrb[0].mxu0
      %v310 = vadd.f32 %v231, %v309
      %v311 = vpop.f32.mrb[0].mxu0
      %312 = vmatprep.mubr.bf16.mxu0 0
      %313 = vmatmul.mubr.bf16.gmra.mrb[0].mxu0 %v264
      %v314 = vpop.f32.mrb[0].mxu0
      %v315 = vadd.f32 %v231, %v314
      %v316 = vpop.f32.mrb[0].mxu0
      %v317 = vpop.f32.mrb[0].mxu0
      %v318 = vadd.f32 %v231, %v317
      %v319 = vpop.f32.mrb[0].mxu0
      %320 = vmatprep.mubr.bf16.mxu0 0
      %321 = vmatmul.mubr.bf16.gmra.mrb[0].mxu0 %v267
      %v322 = vpop.f32.mrb[0].mxu0
      %v323 = vadd.f32 %v231, %v322
      %v324 = vpop.f32.mrb[0].mxu0
      %v325 = vpop.f32.mrb[0].mxu0
      %v326 = vadd.f32 %v231, %v325
      %v327 = vpop.f32.mrb[0].mxu0
      %328 = vmatprep.mubr.bf16.mxu0 0
      %329 = vmatmul.mubr.bf16.gmra.mrb[0].mxu0 %v270
      %v330 = vpop.f32.mrb[0].mxu0
      %v331 = vadd.f32 %v231, %v330
      %v332 = vpop.f32.mrb[0].mxu0
      %v333 = vpop.f32.mrb[0].mxu0
      %v334 = vadd.f32 %v231, %v333
      %v335 = vpop.f32.mrb[0].mxu0
      %336 = vdwg.mxu0
      %v337 = vxor.u32 %v307, 2147483648
      %v338 = vxor.u32 %v310, 2147483648
      %v339 = vxor.u32 %v315, 2147483648
      %v340 = vxor.u32 %v318, 2147483648
      %v341 = vxor.u32 %v323, 2147483648
      %v342 = vxor.u32 %v326, 2147483648
      %v343 = vxor.u32 %v331, 2147483648
      %v344 = vxor.u32 %v334, 2147483648
      %v345 = vmul.f32 %v337, 1.442695
      %v346 = vpow.pop %v345
      %v347 = vmul.f32 %v338, 1.442695
      %v348 = vpow.pop %v347
      %v349 = vmul.f32 %v339, 1.442695
      %v350 = vpow.pop %v349
      %v351 = vmul.f32 %v340, 1.442695
      %v352 = vpow.pop %v351
      %v353 = vmul.f32 %v341, 1.442695
      %v354 = vpow.pop %v353
      %v355 = vmul.f32 %v342, 1.442695
      %v356 = vpow.pop %v355
      %v357 = vmul.f32 %v343, 1.442695
      %v358 = vpow.pop %v357
      %v359 = vmul.f32 %v344, 1.442695
      %v360 = vpow.pop %v359
      %v361 = vadd.f32 %v346, 1.0
      %v362 = vadd.f32 %v348, 1.0
      %v363 = vadd.f32 %v350, 1.0
      %v364 = vadd.f32 %v352, 1.0
      %v365 = vadd.f32 %v354, 1.0
      %v366 = vadd.f32 %v356, 1.0
      %v367 = vadd.f32 %v358, 1.0
      %v368 = vadd.f32 %v360, 1.0
      %v369 = vrcp.pop %v361
      %v370 = vmul.f32 1.0, %v369
      %v371 = vrcp.pop %v362
      %v372 = vmul.f32 1.0, %v371
      %v373 = vrcp.pop %v363
      %v374 = vmul.f32 1.0, %v373
      %v375 = vrcp.pop %v364
      %v376 = vmul.f32 1.0, %v375
      %v377 = vrcp.pop %v365
      %v378 = vmul.f32 1.0, %v377
      %v379 = vrcp.pop %v366
      %v380 = vmul.f32 1.0, %v379
      %v381 = vrcp.pop %v367
      %v382 = vmul.f32 1.0, %v381
      %v383 = vrcp.pop %v368
      %v384 = vmul.f32 1.0, %v383
      %v385 = vmul.f32 %v307, %v370
      %v386 = vmul.f32 %v310, %v372
      %v387 = vmul.f32 %v315, %v374
      %v388 = vmul.f32 %v318, %v376
      %v389 = vmul.f32 %v323, %v378
      %v390 = vmul.f32 %v326, %v380
      %v391 = vmul.f32 %v331, %v382
      %v392 = vmul.f32 %v334, %v384
      %v393 = vpack.c.bf16 %v386, %v385
      %v394 = vpack.c.bf16 %v388, %v387
      %v395 = vpack.c.bf16 %v390, %v389
      %v396 = vpack.c.bf16 %v392, %v391
      %v401 = vunpack.c.l.b16 %v393
      %v402 = vunpack.c.h.b16 %v393
      %v403 = vunpack.c.l.b16 %v394
      %v404 = vunpack.c.h.b16 %v394
      %v405 = vunpack.c.l.b16 %v395
      %v406 = vunpack.c.h.b16 %v395
      %v407 = vunpack.c.l.b16 %v396
      %v408 = vunpack.c.h.b16 %v396
      %v409 = vpack.c.b16 %v401, %v401
      %v410 = vpack.c.b16 %v402, %v402
      %v411 = vpack.c.b16 %v403, %v403
      %v412 = vpack.c.b16 %v404, %v404
      %v413 = vpack.c.b16 %v405, %v405
      %v414 = vpack.c.b16 %v406, %v406
      %v415 = vpack.c.b16 %v407, %v407
      %v416 = vpack.c.b16 %v408, %v408
      %vm425 = vcmask 60416
      %426 = vst.msk [vmem:[%s207] sm:$0xf] %vm425, %v409
      %427 = vst.msk [vmem:[%s207 + $0x4] sm:$0xf] %vm425, %v410
      %428 = vst.msk [vmem:[%s207 + $0x8] sm:$0xf] %vm425, %v411
      %429 = vst.msk [vmem:[%s207 + $0xc] sm:$0xf] %vm425, %v412
      %430 = vst.msk [vmem:[%s207 + $0x10] sm:$0xf] %vm425, %v413
      %431 = vst.msk [vmem:[%s207 + $0x14] sm:$0xf] %vm425, %v414
      %432 = vst.msk [vmem:[%s207 + $0x18] sm:$0xf] %vm425, %v415
      %433 = vst.msk [vmem:[%s207 + $0x1c] sm:$0xf] %vm425, %v416
      %434 = vrot.lane.b32.xlu0 %v409, 120
      %v435 = vpop.permute.xlu0 %434
      %436 = vrot.lane.b32.xlu0 %v410, 120
      %v437 = vpop.permute.xlu0 %436
      %438 = vrot.lane.b32.xlu0 %v411, 120
      %v439 = vpop.permute.xlu0 %438
      %440 = vrot.lane.b32.xlu0 %v412, 120
      %v441 = vpop.permute.xlu0 %440
      %442 = vrot.lane.b32.xlu0 %v413, 120
      %v443 = vpop.permute.xlu0 %442
      %444 = vrot.lane.b32.xlu0 %v414, 120
      %v445 = vpop.permute.xlu0 %444
      %446 = vrot.lane.b32.xlu0 %v415, 120
      %v447 = vpop.permute.xlu0 %446
      %448 = vrot.lane.b32.xlu0 %v416, 120
      %v449 = vpop.permute.xlu0 %448
      %458 = vst.msk [vmem:[%s213] sm:$0xf] %vm425, %v435
      %459 = vst.msk [vmem:[%s213 + $0x4] sm:$0xf] %vm425, %v437
      %460 = vst.msk [vmem:[%s213 + $0x8] sm:$0xf] %vm425, %v439
      %461 = vst.msk [vmem:[%s213 + $0xc] sm:$0xf] %vm425, %v441
      %462 = vst.msk [vmem:[%s213 + $0x10] sm:$0xf] %vm425, %v443
      %463 = vst.msk [vmem:[%s213 + $0x14] sm:$0xf] %vm425, %v445
      %464 = vst.msk [vmem:[%s213 + $0x18] sm:$0xf] %vm425, %v447
      %465 = vst.msk [vmem:[%s213 + $0x1c] sm:$0xf] %vm425, %v449
      %s466 = smul.u32 8, %s16
      %p467 = scmp.lt.s32.totalorder %s466, 15
      %s468 = scalar_select %p467, %s466, 15
      %s469 = smul.addr %s468, 4
      %s470 = scalar_lea.vmem %s3, %s469
      %s471 = smul.u32 8, %s16
      %p472 = scmp.lt.s32.totalorder %s471, 15
      %s473 = scalar_select %p472, %s471, 15
      %s474 = smul.addr %s473, 4
      %s475 = scalar_lea.vmem %s4, %s474
      // Predicated region
      $region33: #{_lambda_.3} parent=31 // pred_check
        %p476 = pneg %p102
      $region34: #{_lambda_.3} parent=31 // pred_check_branch
        %478 = sbr.rel (%p476) target = $region36
      $region35: #{_lambda_.3} parent=31 // pred_region
        %s479 = smul.u32 8, %s16
      $region36: #{_lambda_.3} parent=31 // pred_fallthru
        _
      // Predicated region
      $region37: #{_lambda_.3} parent=31 // pred_check
        %p480 = pneg %p128
      $region38: #{_lambda_.3} parent=31 // pred_check_branch
        %482 = sbr.rel (%p480) target = $region40
      $region39: #{_lambda_.3} parent=31 // pred_region
        %s483 = smul.u32 8, %s16
      $region40: #{_lambda_.3} parent=31 // pred_fallthru
        _
    $region32: #{_lambda_.3} parent=5 // pred_fallthru
      _
    %p484 = scmp.le.s32.totalorder 2, %s11
    // Predicated region
    $region41: #{_lambda_.3} parent=5 // pred_check
      %p485 = pneg %p484
    $region42: #{_lambda_.3} parent=5 // pred_check_branch
      %487 = sbr.rel (%p485) target = $region44
    $region43: #{_lambda_.3} parent=5 // pred_region
      %s488 = ssub.s32 %s11, 2
      // Predicated region
      $region45: #{_lambda_.3} parent=43 // pred_check
        %p489 = pneg %p108
      $region46: #{_lambda_.3} parent=43 // pred_check_branch
        %491 = sbr.rel (%p489) target = $region48
      $region47: #{_lambda_.3} parent=43 // pred_region
        %s492 = smul.u32 8, %s17
        %p493 = scmp.lt.s32.totalorder %s492, 15
        %s494 = scalar_select %p493, %s492, 15
        %s495 = smul.addr %s494, 4
        %s496 = scalar_lea.vmem %s3, %s495
      $region48: #{_lambda_.3} parent=43 // pred_fallthru
        _
      // Predicated region
      $region49: #{_lambda_.3} parent=43 // pred_check
        %p497 = pneg %p134
      $region50: #{_lambda_.3} parent=43 // pred_check_branch
        %499 = sbr.rel (%p497) target = $region52
      $region51: #{_lambda_.3} parent=43 // pred_region
        %s500 = smul.u32 8, %s17
        %p501 = scmp.lt.s32.totalorder %s500, 15
        %s502 = scalar_select %p501, %s500, 15
        %s503 = smul.addr %s502, 4
        %s504 = scalar_lea.vmem %s4, %s503
      $region52: #{_lambda_.3} parent=43 // pred_fallthru
        _
    $region44: #{_lambda_.3} parent=5 // pred_fallthru
      _
  $region6: #{_lambda_.3} parent=0 // loop_footer
    %s15 = sadd.s32 1, %s11
  $region7: #{_lambda_.3} parent=0 // loop_footer_branch
    %10 = sbr.rel target = $region3
  $region8: #{_lambda_.3} parent=0 // loop_exit
    _

// kernel: _lambda_.4
$region0: #{_lambda_.4}
  #allocation0 [shape = 'u32[]', space=smem, size = 0x4, offset = 0x4, fixed_abs, tag = 'smem constant byte address 0x4 - core index']
  #allocation1 [shape = 'u32[144,128]{1,0:T(1,128)}', space=vmem, size = 0x12000, scoped, tag = 'internal scratch']
  %s0 = inlined_call_operand.vmem [shape: bf16[2,64,8], index: 0, kind: input, shape index: {}]
  %s1 = inlined_call_operand.vmem [shape: f32[64,8], index: 1, kind: input, shape index: {}]
  %s2 = inlined_call_operand.vmem [shape: bf16[8,4], index: 2, kind: input, shape index: {}]
  %s3 = inlined_call_operand.vmem [shape: f32[1,4], index: 3, kind: input, shape index: {}]
  %s4 = inlined_call_operand.vmem [shape: bf16[4,8], index: 4, kind: input, shape index: {}]
  %s5 = inlined_call_operand.vmem [shape: f32[1,8], index: 5, kind: input, shape index: {}]
  %s6 = inlined_call_operand.vmem [shape: bf16[4,8], index: 6, kind: input, shape index: {}]
  %s7 = inlined_call_operand.vmem [shape: bf16[4,4], index: 7, kind: input, shape index: {}]
  %s8 = inlined_call_operand.vmem [shape: f32[1,4], index: 8, kind: input, shape index: {}]
  %s9 = inlined_call_operand.vmem [shape: bf16[4,8], index: 9, kind: input, shape index: {}]
  %s10 = inlined_call_operand.vmem [shape: f32[1,8], index: 10, kind: input, shape index: {}]
  %s11 = inlined_call_operand.vmem [shape: bf16[2,64,8], index: 11, kind: output, shape index: {}]
  %s12 = sld [smem:[#allocation0]]
  $region77: #{_lambda_.4} parent=0
    _
  %s14 = ssub.s32 1, %s12
  %s15 = scalar_select 0, %s14, %s12
  loop: start=0, step=1, limit=4
  $region2: #{_lambda_.4} parent=0 // loop_pre_header
    _
  $region3: #{_lambda_.4} parent=0 // loop_header
    %s17 = sphi 0, %s21
    %p18 = scmp.ge.s32.totalorder %s17, 4
    %s27 = sphi 0, %s29
    %s30 = sphi 0, %s27
    %s31 = sphi 0, %s30
    %s47 = sphi 0, %s31
    %s51 = sphi 0, %s51
    %s53 = sphi 0, %s51
    %s54 = sphi 0, %s53
    %s68 = sphi 0, %s54
    %s72 = sphi 0, %s72
    %s74 = sphi 0, %s72
    %s75 = sphi 0, %s74
    %s89 = sphi 0, %s75
    %s93 = sphi 0, %s93
    %s95 = sphi 0, %s93
    %s96 = sphi 0, %s95
    %s110 = sphi 0, %s96
    %s114 = sphi 0, %s114
    %s116 = sphi 0, %s114
    %s117 = sphi 0, %s116
    %s131 = sphi 0, %s117
    %s135 = sphi 0, %s135
    %s137 = sphi 0, %s135
    %s138 = sphi 0, %s137
    %s152 = sphi 0, %s138
    %s156 = sphi 0, %s156
    %s158 = sphi 0, %s156
    %s159 = sphi 0, %s158
    %s173 = sphi 0, %s159
    %s177 = sphi 0, %s177
    %s179 = sphi 0, %s177
    %s180 = sphi 0, %s179
    %s194 = sphi 0, %s180
    %s198 = sphi 0, %s198
    %s200 = sphi 0, %s198
    %s201 = sphi 0, %s200
    %s215 = sphi 0, %s201
    %s219 = sphi 0, %s219
    %s221 = sphi 0, %s219
    %s222 = sphi 0, %s221
    %s236 = sphi 0, %s222
    %s240 = sphi 0, %s240
    %s242 = sphi 0, %s240
    %s243 = sphi 0, %s242
    %s257 = sphi 0, %s243
    %s263 = sphi 0, %s265
    %s266 = sphi 0, %s263
    %s267 = sphi 0, %s266
    %s283 = sphi 0, %s267
  $region4: #{_lambda_.4} parent=0 // loop_header_branch
    %20 = sbr.rel (%p18) target = $region8
  $region5: #{_lambda_.4} parent=0 // loop_body
    %s22 = ssub.s32 %s17, 1
    %s23 = ssub.s32 %s17, 2
    %s24 = sadd.s32 %s17, 1
    %s25 = ssub.s32 %s17, %s24
    %p26 = scmp.eq.s32.totalorder %s25, 0
    %s28 = sadd.s32 %s27, 1
    %s29 = scalar_select %p26, %s27, %s28
    %p32 = pneg %p26
    %p33 = scmp.eq.s32.totalorder %s17, 1
    %p34 = por %p32, %p33
    %p35 = scmp.ne.s32.totalorder %s27, %s30
    %p36 = scmp.eq.s32.totalorder %s17, 0
    %p37 = por %p35, %p36
    %p38 = scmp.ne.s32.totalorder %s27, %s30
    %p39 = scmp.eq.s32.totalorder %s22, 1
    %p40 = por %p38, %p39
    %p41 = scmp.ne.s32.totalorder %s30, %s31
    %p42 = scmp.eq.s32.totalorder %s22, 0
    %p43 = por %p41, %p42
    %p44 = scmp.ne.s32.totalorder %s30, %s31
    %p45 = scmp.eq.s32.totalorder %s23, 1
    %p46 = por %p44, %p45
    %p48 = scmp.ne.s32.totalorder %s31, %s47
    %p49 = scmp.eq.s32.totalorder %s23, 0
    %p50 = por %p48, %p49
    %s52 = sadd.s32 %s51, 1
    %p55 = scmp.eq.s32.totalorder %s17, 1
    %p56 = scmp.ne.s32.totalorder %s51, %s53
    %p57 = scmp.eq.s32.totalorder %s17, 0
    %p58 = por %p56, %p57
    %p59 = scmp.ne.s32.totalorder %s51, %s53
    %p60 = scmp.eq.s32.totalorder %s22, 1
    %p61 = por %p59, %p60
    %p62 = scmp.ne.s32.totalorder %s53, %s54
    %p63 = scmp.eq.s32.totalorder %s22, 0
    %p64 = por %p62, %p63
    %p65 = scmp.ne.s32.totalorder %s53, %s54
    %p66 = scmp.eq.s32.totalorder %s23, 1
    %p67 = por %p65, %p66
    %p69 = scmp.ne.s32.totalorder %s54, %s68
    %p70 = scmp.eq.s32.totalorder %s23, 0
    %p71 = por %p69, %p70
    %s73 = sadd.s32 %s72, 1
    %p76 = scmp.eq.s32.totalorder %s17, 1
    %p77 = scmp.ne.s32.totalorder %s72, %s74
    %p78 = scmp.eq.s32.totalorder %s17, 0
    %p79 = por %p77, %p78
    %p80 = scmp.ne.s32.totalorder %s72, %s74
    %p81 = scmp.eq.s32.totalorder %s22, 1
    %p82 = por %p80, %p81
    %p83 = scmp.ne.s32.totalorder %s74, %s75
    %p84 = scmp.eq.s32.totalorder %s22, 0
    %p85 = por %p83, %p84
    %p86 = scmp.ne.s32.totalorder %s74, %s75
    %p87 = scmp.eq.s32.totalorder %s23, 1
    %p88 = por %p86, %p87
    %p90 = scmp.ne.s32.totalorder %s75, %s89
    %p91 = scmp.eq.s32.totalorder %s23, 0
    %p92 = por %p90, %p91
    %s94 = sadd.s32 %s93, 1
    %p97 = scmp.eq.s32.totalorder %s17, 1
    %p98 = scmp.ne.s32.totalorder %s93, %s95
    %p99 = scmp.eq.s32.totalorder %s17, 0
    %p100 = por %p98, %p99
    %p101 = scmp.ne.s32.totalorder %s93, %s95
    %p102 = scmp.eq.s32.totalorder %s22, 1
    %p103 = por %p101, %p102
    %p104 = scmp.ne.s32.totalorder %s95, %s96
    %p105 = scmp.eq.s32.totalorder %s22, 0
    %p106 = por %p104, %p105
    %p107 = scmp.ne.s32.totalorder %s95, %s96
    %p108 = scmp.eq.s32.totalorder %s23, 1
    %p109 = por %p107, %p108
    %p111 = scmp.ne.s32.totalorder %s96, %s110
    %p112 = scmp.eq.s32.totalorder %s23, 0
    %p113 = por %p111, %p112
    %s115 = sadd.s32 %s114, 1
    %p118 = scmp.eq.s32.totalorder %s17, 1
    %p119 = scmp.ne.s32.totalorder %s114, %s116
    %p120 = scmp.eq.s32.totalorder %s17, 0
    %p121 = por %p119, %p120
    %p122 = scmp.ne.s32.totalorder %s114, %s116
    %p123 = scmp.eq.s32.totalorder %s22, 1
    %p124 = por %p122, %p123
    %p125 = scmp.ne.s32.totalorder %s116, %s117
    %p126 = scmp.eq.s32.totalorder %s22, 0
    %p127 = por %p125, %p126
    %p128 = scmp.ne.s32.totalorder %s116, %s117
    %p129 = scmp.eq.s32.totalorder %s23, 1
    %p130 = por %p128, %p129
    %p132 = scmp.ne.s32.totalorder %s117, %s131
    %p133 = scmp.eq.s32.totalorder %s23, 0
    %p134 = por %p132, %p133
    %s136 = sadd.s32 %s135, 1
    %p139 = scmp.eq.s32.totalorder %s17, 1
    %p140 = scmp.ne.s32.totalorder %s135, %s137
    %p141 = scmp.eq.s32.totalorder %s17, 0
    %p142 = por %p140, %p141
    %p143 = scmp.ne.s32.totalorder %s135, %s137
    %p144 = scmp.eq.s32.totalorder %s22, 1
    %p145 = por %p143, %p144
    %p146 = scmp.ne.s32.totalorder %s137, %s138
    %p147 = scmp.eq.s32.totalorder %s22, 0
    %p148 = por %p146, %p147
    %p149 = scmp.ne.s32.totalorder %s137, %s138
    %p150 = scmp.eq.s32.totalorder %s23, 1
    %p151 = por %p149, %p150
    %p153 = scmp.ne.s32.totalorder %s138, %s152
    %p154 = scmp.eq.s32.totalorder %s23, 0
    %p155 = por %p153, %p154
    %s157 = sadd.s32 %s156, 1
    %p160 = scmp.eq.s32.totalorder %s17, 1
    %p161 = scmp.ne.s32.totalorder %s156, %s158
    %p162 = scmp.eq.s32.totalorder %s17, 0
    %p163 = por %p161, %p162
    %p164 = scmp.ne.s32.totalorder %s156, %s158
    %p165 = scmp.eq.s32.totalorder %s22, 1
    %p166 = por %p164, %p165
    %p167 = scmp.ne.s32.totalorder %s158, %s159
    %p168 = scmp.eq.s32.totalorder %s22, 0
    %p169 = por %p167, %p168
    %p170 = scmp.ne.s32.totalorder %s158, %s159
    %p171 = scmp.eq.s32.totalorder %s23, 1
    %p172 = por %p170, %p171
    %p174 = scmp.ne.s32.totalorder %s159, %s173
    %p175 = scmp.eq.s32.totalorder %s23, 0
    %p176 = por %p174, %p175
    %s178 = sadd.s32 %s177, 1
    %p181 = scmp.eq.s32.totalorder %s17, 1
    %p182 = scmp.ne.s32.totalorder %s177, %s179
    %p183 = scmp.eq.s32.totalorder %s17, 0
    %p184 = por %p182, %p183
    %p185 = scmp.ne.s32.totalorder %s177, %s179
    %p186 = scmp.eq.s32.totalorder %s22, 1
    %p187 = por %p185, %p186
    %p188 = scmp.ne.s32.totalorder %s179, %s180
    %p189 = scmp.eq.s32.totalorder %s22, 0
    %p190 = por %p188, %p189
    %p191 = scmp.ne.s32.totalorder %s179, %s180
    %p192 = scmp.eq.s32.totalorder %s23, 1
    %p193 = por %p191, %p192
    %p195 = scmp.ne.s32.totalorder %s180, %s194
    %p196 = scmp.eq.s32.totalorder %s23, 0
    %p197 = por %p195, %p196
    %s199 = sadd.s32 %s198, 1
    %p202 = scmp.eq.s32.totalorder %s17, 1
    %p203 = scmp.ne.s32.totalorder %s198, %s200
    %p204 = scmp.eq.s32.totalorder %s17, 0
    %p205 = por %p203, %p204
    %p206 = scmp.ne.s32.totalorder %s198, %s200
    %p207 = scmp.eq.s32.totalorder %s22, 1
    %p208 = por %p206, %p207
    %p209 = scmp.ne.s32.totalorder %s200, %s201
    %p210 = scmp.eq.s32.totalorder %s22, 0
    %p211 = por %p209, %p210
    %p212 = scmp.ne.s32.totalorder %s200, %s201
    %p213 = scmp.eq.s32.totalorder %s23, 1
    %p214 = por %p212, %p213
    %p216 = scmp.ne.s32.totalorder %s201, %s215
    %p217 = scmp.eq.s32.totalorder %s23, 0
    %p218 = por %p216, %p217
    %s220 = sadd.s32 %s219, 1
    %p223 = scmp.eq.s32.totalorder %s17, 1
    %p224 = scmp.ne.s32.totalorder %s219, %s221
    %p225 = scmp.eq.s32.totalorder %s17, 0
    %p226 = por %p224, %p225
    %p227 = scmp.ne.s32.totalorder %s219, %s221
    %p228 = scmp.eq.s32.totalorder %s22, 1
    %p229 = por %p227, %p228
    %p230 = scmp.ne.s32.totalorder %s221, %s222
    %p231 = scmp.eq.s32.totalorder %s22, 0
    %p232 = por %p230, %p231
    %p233 = scmp.ne.s32.totalorder %s221, %s222
    %p234 = scmp.eq.s32.totalorder %s23, 1
    %p235 = por %p233, %p234
    %p237 = scmp.ne.s32.totalorder %s222, %s236
    %p238 = scmp.eq.s32.totalorder %s23, 0
    %p239 = por %p237, %p238
    %s241 = sadd.s32 %s240, 1
    %p244 = scmp.eq.s32.totalorder %s17, 1
    %p245 = scmp.ne.s32.totalorder %s240, %s242
    %p246 = scmp.eq.s32.totalorder %s17, 0
    %p247 = por %p245, %p246
    %p248 = scmp.ne.s32.totalorder %s240, %s242
    %p249 = scmp.eq.s32.totalorder %s22, 1
    %p250 = por %p248, %p249
    %p251 = scmp.ne.s32.totalorder %s242, %s243
    %p252 = scmp.eq.s32.totalorder %s22, 0
    %p253 = por %p251, %p252
    %p254 = scmp.ne.s32.totalorder %s242, %s243
    %p255 = scmp.eq.s32.totalorder %s23, 1
    %p256 = por %p254, %p255
    %p258 = scmp.ne.s32.totalorder %s243, %s257
    %p259 = scmp.eq.s32.totalorder %s23, 0
    %p260 = por %p258, %p259
    %s261 = ssub.s32 %s17, %s24
    %p262 = scmp.eq.s32.totalorder %s261, 0
    %s264 = sadd.s32 %s263, 1
    %s265 = scalar_select %p262, %s263, %s264
    %p268 = pneg %p262
    %p269 = scmp.eq.s32.totalorder %s17, 1
    %p270 = por %p268, %p269
    %p271 = scmp.ne.s32.totalorder %s263, %s266
    %p272 = scmp.eq.s32.totalorder %s17, 0
    %p273 = por %p271, %p272
    %p274 = scmp.ne.s32.totalorder %s263, %s266
    %p275 = scmp.eq.s32.totalorder %s22, 1
    %p276 = por %p274, %p275
    %p277 = scmp.ne.s32.totalorder %s266, %s267
    %p278 = scmp.eq.s32.totalorder %s22, 0
    %p279 = por %p277, %p278
    %p280 = scmp.ne.s32.totalorder %s266, %s267
    %p281 = scmp.eq.s32.totalorder %s23, 1
    %p282 = por %p280, %p281
    %p284 = scmp.ne.s32.totalorder %s267, %s283
    %p285 = scmp.eq.s32.totalorder %s23, 0
    %p286 = por %p284, %p285
    %p287 = scmp.le.s32.totalorder 1, %s17
    %p288 = scmp.lt.s32.totalorder %s17, 3
    %p289 = pnand %p287, %p288
    %p290 = pneg %p289
    // Predicated region
    $region9: #{_lambda_.4} parent=5 // pred_check
      _
    $region10: #{_lambda_.4} parent=5 // pred_check_branch
      %292 = sbr.rel (%p289) target = $region12
    $region11: #{_lambda_.4} parent=5 // pred_region
      %s293 = ssub.s32 %s17, 1
      // Predicated region
      $region13: #{_lambda_.4} parent=11 // pred_check
        %p294 = pneg %p64
      $region14: #{_lambda_.4} parent=11 // pred_check_branch
        %296 = sbr.rel (%p294) target = $region16
      $region15: #{_lambda_.4} parent=11 // pred_region
        _
      $region16: #{_lambda_.4} parent=11 // pred_fallthru
        _
      // Predicated region
      $region17: #{_lambda_.4} parent=11 // pred_check
        %p297 = pneg %p85
      $region18: #{_lambda_.4} parent=11 // pred_check_branch
        %299 = sbr.rel (%p297) target = $region20
      $region19: #{_lambda_.4} parent=11 // pred_region
        _
      $region20: #{_lambda_.4} parent=11 // pred_fallthru
        _
      // Predicated region
      $region21: #{_lambda_.4} parent=11 // pred_check
        %p300 = pneg %p106
      $region22: #{_lambda_.4} parent=11 // pred_check_branch
        %302 = sbr.rel (%p300) target = $region24
      $region23: #{_lambda_.4} parent=11 // pred_region
        _
      $region24: #{_lambda_.4} parent=11 // pred_fallthru
        _
      // Predicated region
      $region25: #{_lambda_.4} parent=11 // pred_check
        %p303 = pneg %p127
      $region26: #{_lambda_.4} parent=11 // pred_check_branch
        %305 = sbr.rel (%p303) target = $region28
      $region27: #{_lambda_.4} parent=11 // pred_region
        _
      $region28: #{_lambda_.4} parent=11 // pred_fallthru
        _
      // Predicated region
      $region29: #{_lambda_.4} parent=11 // pred_check
        %p306 = pneg %p148
      $region30: #{_lambda_.4} parent=11 // pred_check_branch
        %308 = sbr.rel (%p306) target = $region32
      $region31: #{_lambda_.4} parent=11 // pred_region
        _
      $region32: #{_lambda_.4} parent=11 // pred_fallthru
        _
      // Predicated region
      $region33: #{_lambda_.4} parent=11 // pred_check
        %p309 = pneg %p169
      $region34: #{_lambda_.4} parent=11 // pred_check_branch
        %311 = sbr.rel (%p309) target = $region36
      $region35: #{_lambda_.4} parent=11 // pred_region
        _
      $region36: #{_lambda_.4} parent=11 // pred_fallthru
        _
      // Predicated region
      $region37: #{_lambda_.4} parent=11 // pred_check
        %p312 = pneg %p190
      $region38: #{_lambda_.4} parent=11 // pred_check_branch
        %314 = sbr.rel (%p312) target = $region40
      $region39: #{_lambda_.4} parent=11 // pred_region
        _
      $region40: #{_lambda_.4} parent=11 // pred_fallthru
        _
      // Predicated region
      $region41: #{_lambda_.4} parent=11 // pred_check
        %p315 = pneg %p211
      $region42: #{_lambda_.4} parent=11 // pred_check_branch
        %317 = sbr.rel (%p315) target = $region44
      $region43: #{_lambda_.4} parent=11 // pred_region
        _
      $region44: #{_lambda_.4} parent=11 // pred_fallthru
        _
      // Predicated region
      $region45: #{_lambda_.4} parent=11 // pred_check
        %p318 = pneg %p232
      $region46: #{_lambda_.4} parent=11 // pred_check_branch
        %320 = sbr.rel (%p318) target = $region48
      $region47: #{_lambda_.4} parent=11 // pred_region
        _
      $region48: #{_lambda_.4} parent=11 // pred_fallthru
        _
      // Predicated region
      $region49: #{_lambda_.4} parent=11 // pred_check
        %p321 = pneg %p253
      $region50: #{_lambda_.4} parent=11 // pred_check_branch
        %323 = sbr.rel (%p321) target = $region52
      $region51: #{_lambda_.4} parent=11 // pred_region
        _
      $region52: #{_lambda_.4} parent=11 // pred_fallthru
        _
    $region12: #{_lambda_.4} parent=5 // pred_fallthru
      _
    %p324 = scmp.lt.s32.totalorder %s17, 2
    // Predicated region
    $region53: #{_lambda_.4} parent=5 // pred_check
      %p325 = pneg %p324
    $region54: #{_lambda_.4} parent=5 // pred_check_branch
      %327 = sbr.rel (%p325) target = $region56
    $region55: #{_lambda_.4} parent=5 // pred_region
      // Predicated region
      $region57: #{_lambda_.4} parent=55 // pred_check
        %p328 = pneg %p37
      $region58: #{_lambda_.4} parent=55 // pred_check_branch
        %330 = sbr.rel (%p328) target = $region60
      $region59: #{_lambda_.4} parent=55 // pred_region
        %p331 = scmp.lt.s32.totalorder %s17, 1
        %s332 = scalar_select %p331, %s17, 1
        %s333 = smul.addr %s332, 8
        %s334 = smul.addr %s333, 4
        %s335 = scalar_lea.vmem %s0, %s334
      $region60: #{_lambda_.4} parent=55 // pred_fallthru
        _
    $region56: #{_lambda_.4} parent=5 // pred_fallthru
      _
    %p336 = scmp.le.s32.totalorder 1, %s17
    %p337 = scmp.lt.s32.totalorder %s17, 3
    %p338 = pnand %p336, %p337
    %p339 = pneg %p338
    // Predicated region
    $region61: #{_lambda_.4} parent=5 // pred_check
      _
    $region62: #{_lambda_.4} parent=5 // pred_check_branch
      %341 = sbr.rel (%p338) target = $region64
    $region63: #{_lambda_.4} parent=5 // pred_region
      %s342 = ssub.s32 %s17, 1
      %p343 = scmp.lt.s32.totalorder %s22, 1
      %s344 = scalar_select %p343, %s22, 1
      %s345 = smul.addr %s344, 8
      %s346 = smul.addr %s345, 4
      %s347 = scalar_lea.vmem %s0, %s346
      %p348 = pneg %p43
      %p349 = pneg %p40
      %p350 = pneg %p64
      %p351 = pneg %p61
      %p352 = pneg %p85
      %p353 = pneg %p82
      %p354 = pneg %p106
      %p355 = pneg %p103
      %p356 = pneg %p127
      %p357 = pneg %p124
      %p358 = pneg %p148
      %p359 = pneg %p145
      %p360 = pneg %p169
      %p361 = pneg %p166
      %p362 = pneg %p190
      %p363 = pneg %p187
      %p364 = pneg %p211
      %p365 = pneg %p208
      %p366 = pneg %p232
      %p367 = pneg %p229
      %p368 = pneg %p253
      %p369 = pneg %p250
      %p370 = pneg %p279
      %p371 = pneg %p276
      %p372 = scmp.lt.s32.totalorder %s22, 1
      %s373 = scalar_select %p372, %s22, 1
      %s374 = smul.addr %s373, 8
      %s375 = smul.addr %s374, 4
      %s376 = scalar_lea.vmem %s11, %s375
      %p377 = scmp.lt.s32.totalorder %s22, 1
      %s378 = scalar_select %p377, %s22, 1
      %s379 = smul.addr %s378, 8
      %s380 = smul.addr %s379, 4
      %s381 = scalar_lea.vmem %s0, %s380
      %p382 = scmp.lt.s32.totalorder %s22, 1
      %s383 = scalar_select %p382, %s22, 1
      %s384 = smul.addr %s383, 8
      %s385 = smul.addr %s384, 4
      %s386 = scalar_lea.vmem %s11, %s385
      %v388 = vld [vmem:[%s381] sm:$0xf]
      %v389 = vld [vmem:[%s381 + $0x4] sm:$0xf]
      %v390 = vld [vmem:[%s381 + $0x8] sm:$0xf]
      %v391 = vld [vmem:[%s381 + $0xc] sm:$0xf]
      %v392 = vld [vmem:[%s381 + $0x10] sm:$0xf]
      %v393 = vld [vmem:[%s381 + $0x14] sm:$0xf]
      %v394 = vld [vmem:[%s381 + $0x18] sm:$0xf]
      %v395 = vld [vmem:[%s381 + $0x1c] sm:$0xf]
      %v396 = vld [vmem:[%s2] sm:$0xf]
      %v397 = vld [vmem:[%s3] sm:$0x1]
      %v399 = vlaneseq
      %v400 = vshrl.u32 %v399, 7
      %v401 = vsub.s32 0, %v400
      %v402 = vrot.slane %v397, %v401
      %v412 = vunpack.c.l.b16 %v388
      %v413 = vunpack.c.l.b16 %v389
      %v414 = vunpack.c.l.b16 %v390
      %v415 = vunpack.c.l.b16 %v391
      %v416 = vunpack.c.l.b16 %v392
      %v417 = vunpack.c.l.b16 %v393
      %v418 = vunpack.c.l.b16 %v394
      %v419 = vunpack.c.l.b16 %v395
      %v420 = vpack.c.b16 %v413, %v412
      %v421 = vpack.c.b16 %v415, %v414
      %v422 = vpack.c.b16 %v417, %v416
      %v423 = vpack.c.b16 %v419, %v418
      %vm424 = vcmask 64512
      %v426 = vsel %vm424, %v420, 0
      %v429 = vsel %vm424, %v421, 0
      %v432 = vsel %vm424, %v422, 0
      %v435 = vsel %vm424, %v423, 0
      %vm437 = vcmask 1043456
      %v439 = vsel %vm437, %v396, 0
      %441 = vmatprep.subr.bf16.mxu0 0
      %442 = vmatpush1.bf16.msra.mxu0 %v439
      %443 = vmatprep.subr.bf16.mxu0 0
      %444 = vmatpush1.bf16.msra.mxu0 0
      %445 = vmatprep.subr.bf16.mxu0 0
      %446 = vmatpush1.bf16.msra.mxu0 0
      %447 = vmatprep.subr.bf16.mxu0 0
      %448 = vmatpush1.bf16.msra.mxu0 0
      %449 = vmatprep.subr.bf16.mxu0 0
      %450 = vmatpush1.bf16.msra.mxu0 0
      %451 = vmatprep.subr.bf16.mxu0 0
      %452 = vmatpush1.bf16.msra.mxu0 0
      %453 = vmatprep.subr.bf16.mxu0 0
      %454 = vmatpush1.bf16.msra.mxu0 0
      %455 = vmatprep.subr.bf16.mxu0 0
      %456 = vmatpush1.bf16.msra.mxu0 0
      %457 = vmatprep.subr.bf16.mxu0 0
      %458 = vmatpush1.bf16.msra.mxu0 0
      %459 = vmatprep.subr.bf16.mxu0 0
      %460 = vmatpush1.bf16.msra.mxu0 0
      %461 = vmatprep.subr.bf16.mxu0 0
      %462 = vmatpush1.bf16.msra.mxu0 0
      %463 = vmatprep.subr.bf16.mxu0 0
      %464 = vmatpush1.bf16.msra.mxu0 0
      %465 = vmatprep.subr.bf16.mxu0 0
      %466 = vmatpush1.bf16.msra.mxu0 0
      %467 = vmatprep.subr.bf16.mxu0 0
      %468 = vmatpush1.bf16.msra.mxu0 0
      %469 = vmatprep.subr.bf16.mxu0 0
      %470 = vmatpush1.bf16.msra.mxu0 0
      %471 = vmatprep.subr.bf16.mxu0 0
      %472 = vmatpush1.bf16.msra.mxu0 0
      %473 = vmatprep.mubr.bf16.mxu0 0
      %474 = vmatmul.mubr.bf16.gmra.mrb[0].mxu0 %v426
      %v475 = vpop.f32.mrb[0].mxu0
      %v476 = vadd.f32 %v402, %v475
      %v477 = vpop.f32.mrb[0].mxu0
      %v478 = vpop.f32.mrb[0].mxu0
      %v479 = vadd.f32 %v402, %v478
      %v480 = vpop.f32.mrb[0].mxu0
      %481 = vmatprep.mubr.bf16.mxu0 0
      %482 = vmatmul.mubr.bf16.gmra.mrb[0].mxu0 %v429
      %v483 = vpop.f32.mrb[0].mxu0
      %v484 = vadd.f32 %v402, %v483
      %v485 = vpop.f32.mrb[0].mxu0
      %v486 = vpop.f32.mrb[0].mxu0
      %v487 = vadd.f32 %v402, %v486
      %v488 = vpop.f32.mrb[0].mxu0
      %489 = vmatprep.mubr.bf16.mxu0 0
      %490 = vmatmul.mubr.bf16.gmra.mrb[0].mxu0 %v432
      %v491 = vpop.f32.mrb[0].mxu0
      %v492 = vadd.f32 %v402, %v491
      %v493 = vpop.f32.mrb[0].mxu0
      %v494 = vpop.f32.mrb[0].mxu0
      %v495 = vadd.f32 %v402, %v494
      %v496 = vpop.f32.mrb[0].mxu0
      %497 = vmatprep.mubr.bf16.mxu0 0
      %498 = vmatmul.mubr.bf16.gmra.mrb[0].mxu0 %v435
      %v499 = vpop.f32.mrb[0].mxu0
      %v500 = vadd.f32 %v402, %v499
      %v501 = vpop.f32.mrb[0].mxu0
      %v502 = vpop.f32.mrb[0].mxu0
      %v503 = vadd.f32 %v402, %v502
      %v504 = vpop.f32.mrb[0].mxu0
      %505 = vdwg.mxu0
      %v506 = vxor.u32 %v476, 2147483648
      %v507 = vxor.u32 %v479, 2147483648
      %v508 = vxor.u32 %v484, 2147483648
      %v509 = vxor.u32 %v487, 2147483648
      %v510 = vxor.u32 %v492, 2147483648
      %v511 = vxor.u32 %v495, 2147483648
      %v512 = vxor.u32 %v500, 2147483648
      %v513 = vxor.u32 %v503, 2147483648
      %v514 = vmul.f32 %v506, 1.442695
      %v515 = vpow.pop %v514
      %v516 = vmul.f32 %v507, 1.442695
      %v517 = vpow.pop %v516
      %v518 = vmul.f32 %v508, 1.442695
      %v519 = vpow.pop %v518
      %v520 = vmul.f32 %v509, 1.442695
      %v521 = vpow.pop %v520
      %v522 = vmul.f32 %v510, 1.442695
      %v523 = vpow.pop %v522
      %v524 = vmul.f32 %v511, 1.442695
      %v525 = vpow.pop %v524
      %v526 = vmul.f32 %v512, 1.442695
      %v527 = vpow.pop %v526
      %v528 = vmul.f32 %v513, 1.442695
      %v529 = vpow.pop %v528
      %v530 = vadd.f32 %v515, 1.0
      %v531 = vadd.f32 %v517, 1.0
      %v532 = vadd.f32 %v519, 1.0
      %v533 = vadd.f32 %v521, 1.0
      %v534 = vadd.f32 %v523, 1.0
      %v535 = vadd.f32 %v525, 1.0
      %v536 = vadd.f32 %v527, 1.0
      %v537 = vadd.f32 %v529, 1.0
      %v538 = vrcp.pop %v530
      %v539 = vmul.f32 1.0, %v538
      %v540 = vrcp.pop %v531
      %v541 = vmul.f32 1.0, %v540
      %v542 = vrcp.pop %v532
      %v543 = vmul.f32 1.0, %v542
      %v544 = vrcp.pop %v533
      %v545 = vmul.f32 1.0, %v544
      %v546 = vrcp.pop %v534
      %v547 = vmul.f32 1.0, %v546
      %v548 = vrcp.pop %v535
      %v549 = vmul.f32 1.0, %v548
      %v550 = vrcp.pop %v536
      %v551 = vmul.f32 1.0, %v550
      %v552 = vrcp.pop %v537
      %v553 = vmul.f32 1.0, %v552
      %v554 = vmul.f32 %v476, %v539
      %v555 = vmul.f32 %v479, %v541
      %v556 = vmul.f32 %v484, %v543
      %v557 = vmul.f32 %v487, %v545
      %v558 = vmul.f32 %v492, %v547
      %v559 = vmul.f32 %v495, %v549
      %v560 = vmul.f32 %v500, %v551
      %v561 = vmul.f32 %v503, %v553
      %v562 = vpack.c.bf16 %v555, %v554
      %v563 = vpack.c.bf16 %v557, %v556
      %v564 = vpack.c.bf16 %v559, %v558
      %v565 = vpack.c.bf16 %v561, %v560
      %v566 = vld [vmem:[%s4] sm:$0x3]
      %v567 = vld [vmem:[%s5] sm:$0x1]
      %v569 = vlaneseq
      %v570 = vshrl.u32 %v569, 7
      %v571 = vsub.s32 0, %v570
      %v572 = vrot.slane %v567, %v571
      %vm574 = vcmask 31744
      %v576 = vsel %vm574, %v562, 0
      %v579 = vsel %vm574, %v563, 0
      %v582 = vsel %vm574, %v564, 0
      %v585 = vsel %vm574, %v565, 0
      %vm587 = vcmask 1041408
      %v589 = vsel %vm587, %v566, 0
      %591 = vmatprep.subr.bf16.mxu0 0
      %592 = vmatpush1.bf16.msra.mxu0 %v589
      %593 = vmatprep.subr.bf16.mxu0 0
      %594 = vmatpush1.bf16.msra.mxu0 0
      %595 = vmatprep.subr.bf16.mxu0 0
      %596 = vmatpush1.bf16.msra.mxu0 0
      %597 = vmatprep.subr.bf16.mxu0 0
      %598 = vmatpush1.bf16.msra.mxu0 0
      %599 = vmatprep.subr.bf16.mxu0 0
      %600 = vmatpush1.bf16.msra.mxu0 0
      %601 = vmatprep.subr.bf16.mxu0 0
      %602 = vmatpush1.bf16.msra.mxu0 0
      %603 = vmatprep.subr.bf16.mxu0 0
      %604 = vmatpush1.bf16.msra.mxu0 0
      %605 = vmatprep.subr.bf16.mxu0 0
      %606 = vmatpush1.bf16.msra.mxu0 0
      %607 = vmatprep.subr.bf16.mxu0 0
      %608 = vmatpush1.bf16.msra.mxu0 0
      %609 = vmatprep.subr.bf16.mxu0 0
      %610 = vmatpush1.bf16.msra.mxu0 0
      %611 = vmatprep.subr.bf16.mxu0 0
      %612 = vmatpush1.bf16.msra.mxu0 0
      %613 = vmatprep.subr.bf16.mxu0 0
      %614 = vmatpush1.bf16.msra.mxu0 0
      %615 = vmatprep.subr.bf16.mxu0 0
      %616 = vmatpush1.bf16.msra.mxu0 0
      %617 = vmatprep.subr.bf16.mxu0 0
      %618 = vmatpush1.bf16.msra.mxu0 0
      %619 = vmatprep.subr.bf16.mxu0 0
      %620 = vmatpush1.bf16.msra.mxu0 0
      %621 = vmatprep.subr.bf16.mxu0 0
      %622 = vmatpush1.bf16.msra.mxu0 0
      %623 = vmatprep.mubr.bf16.mxu0 0
      %624 = vmatmul.mubr.bf16.gmra.mrb[0].mxu0 %v576
      %v625 = vpop.f32.mrb[0].mxu0
      %v626 = vadd.f32 %v572, %v625
      %v627 = vpop.f32.mrb[0].mxu0
      %v628 = vpop.f32.mrb[0].mxu0
      %v629 = vadd.f32 %v572, %v628
      %v630 = vpop.f32.mrb[0].mxu0
      %631 = vmatprep.mubr.bf16.mxu0 0
      %632 = vmatmul.mubr.bf16.gmra.mrb[0].mxu0 %v579
      %v633 = vpop.f32.mrb[0].mxu0
      %v634 = vadd.f32 %v572, %v633
      %v635 = vpop.f32.mrb[0].mxu0
      %v636 = vpop.f32.mrb[0].mxu0
      %v637 = vadd.f32 %v572, %v636
      %v638 = vpop.f32.mrb[0].mxu0
      %639 = vmatprep.mubr.bf16.mxu0 0
      %640 = vmatmul.mubr.bf16.gmra.mrb[0].mxu0 %v582
      %v641 = vpop.f32.mrb[0].mxu0
      %v642 = vadd.f32 %v572, %v641
      %v643 = vpop.f32.mrb[0].mxu0
      %v644 = vpop.f32.mrb[0].mxu0
      %v645 = vadd.f32 %v572, %v644
      %v646 = vpop.f32.mrb[0].mxu0
      %647 = vmatprep.mubr.bf16.mxu0 0
      %648 = vmatmul.mubr.bf16.gmra.mrb[0].mxu0 %v585
      %v649 = vpop.f32.mrb[0].mxu0
      %v650 = vadd.f32 %v572, %v649
      %v651 = vpop.f32.mrb[0].mxu0
      %v652 = vpop.f32.mrb[0].mxu0
      %v653 = vadd.f32 %v572, %v652
      %v654 = vpop.f32.mrb[0].mxu0
      %655 = vdwg.mxu0
      %v656 = vld [vmem:[%s6] sm:$0x3]
      %v657 = vld [vmem:[%s1] sm:$0xff]
      %v658 = vld [vmem:[%s1 + $0x8] sm:$0xff]
      %v659 = vld [vmem:[%s1 + $0x10] sm:$0xff]
      %v660 = vld [vmem:[%s1 + $0x18] sm:$0xff]
      %v661 = vld [vmem:[%s1 + $0x20] sm:$0xff]
      %v662 = vld [vmem:[%s1 + $0x28] sm:$0xff]
      %v663 = vld [vmem:[%s1 + $0x30] sm:$0xff]
      %v664 = vld [vmem:[%s1 + $0x38] sm:$0xff]
      %v666 = vsel %vm587, %v656, 0
      %668 = vmatprep.subr.bf16.mxu0 0
      %669 = vmatpush1.bf16.msra.mxu0 %v666
      %670 = vmatprep.subr.bf16.mxu0 0
      %671 = vmatpush1.bf16.msra.mxu0 0
      %672 = vmatprep.subr.bf16.mxu0 0
      %673 = vmatpush1.bf16.msra.mxu0 0
      %674 = vmatprep.subr.bf16.mxu0 0
      %675 = vmatpush1.bf16.msra.mxu0 0
      %676 = vmatprep.subr.bf16.mxu0 0
      %677 = vmatpush1.bf16.msra.mxu0 0
      %678 = vmatprep.subr.bf16.mxu0 0
      %679 = vmatpush1.bf16.msra.mxu0 0
      %680 = vmatprep.subr.bf16.mxu0 0
      %681 = vmatpush1.bf16.msra.mxu0 0
      %682 = vmatprep.subr.bf16.mxu0 0
      %683 = vmatpush1.bf16.msra.mxu0 0
      %684 = vmatprep.subr.bf16.mxu0 0
      %685 = vmatpush1.bf16.msra.mxu0 0
      %686 = vmatprep.subr.bf16.mxu0 0
      %687 = vmatpush1.bf16.msra.mxu0 0
      %688 = vmatprep.subr.bf16.mxu0 0
      %689 = vmatpush1.bf16.msra.mxu0 0
      %690 = vmatprep.subr.bf16.mxu0 0
      %691 = vmatpush1.bf16.msra.mxu0 0
      %692 = vmatprep.subr.bf16.mxu0 0
      %693 = vmatpush1.bf16.msra.mxu0 0
      %694 = vmatprep.subr.bf16.mxu0 0
      %695 = vmatpush1.bf16.msra.mxu0 0
      %696 = vmatprep.subr.bf16.mxu0 0
      %697 = vmatpush1.bf16.msra.mxu0 0
      %698 = vmatprep.subr.bf16.mxu0 0
      %699 = vmatpush1.bf16.msra.mxu0 0
      %700 = vmatprep.mubr.bf16.mxu0 0
      %701 = vmatmul.mubr.bf16.gmra.mrb[0].mxu0 %v576
      %v702 = vpop.f32.mrb[0].mxu0
      %v703 = vadd.f32 %v657, %v702
      %v704 = vpop.f32.mrb[0].mxu0
      %v705 = vpop.f32.mrb[0].mxu0
      %v706 = vadd.f32 %v658, %v705
      %v707 = vpop.f32.mrb[0].mxu0
      %708 = vmatprep.mubr.bf16.mxu0 0
      %709 = vmatmul.mubr.bf16.gmra.mrb[0].mxu0 %v579
      %v710 = vpop.f32.mrb[0].mxu0
      %v711 = vadd.f32 %v659, %v710
      %v712 = vpop.f32.mrb[0].mxu0
      %v713 = vpop.f32.mrb[0].mxu0
      %v714 = vadd.f32 %v660, %v713
      %v715 = vpop.f32.mrb[0].mxu0
      %716 = vmatprep.mubr.bf16.mxu0 0
      %717 = vmatmul.mubr.bf16.gmra.mrb[0].mxu0 %v582
      %v718 = vpop.f32.mrb[0].mxu0
      %v719 = vadd.f32 %v661, %v718
      %v720 = vpop.f32.mrb[0].mxu0
      %v721 = vpop.f32.mrb[0].mxu0
      %v722 = vadd.f32 %v662, %v721
      %v723 = vpop.f32.mrb[0].mxu0
      %724 = vmatprep.mubr.bf16.mxu0 0
      %725 = vmatmul.mubr.bf16.gmra.mrb[0].mxu0 %v585
      %v726 = vpop.f32.mrb[0].mxu0
      %v727 = vadd.f32 %v663, %v726
      %v728 = vpop.f32.mrb[0].mxu0
      %v729 = vpop.f32.mrb[0].mxu0
      %v730 = vadd.f32 %v664, %v729
      %v731 = vpop.f32.mrb[0].mxu0
      %732 = vdwg.mxu0
      %v733 = vpack.c.bf16 %v706, %v703
      %v734 = vpack.c.bf16 %v714, %v711
      %v735 = vpack.c.bf16 %v722, %v719
      %v736 = vpack.c.bf16 %v730, %v727
      %v737 = vpack.c.bf16 %v629, %v626
      %v738 = vpack.c.bf16 %v637, %v634
      %v739 = vpack.c.bf16 %v645, %v642
      %v740 = vpack.c.bf16 %v653, %v650
      %v742 = vsel %vm424, %v733, 0
      %v745 = vsel %vm424, %v734, 0
      %v748 = vsel %vm424, %v735, 0
      %v751 = vsel %vm424, %v736, 0
      %v754 = vsel %vm424, %v737, 0
      %v757 = vsel %vm424, %v738, 0
      %v760 = vsel %vm424, %v739, 0
      %v763 = vsel %vm424, %v740, 0
      %765 = vmatprep.subr.bf16.mxu0 0
      %766 = vmatpush1.bf16.xpose.msra.mxu0 %v754
      %767 = vmatprep.subr.bf16.mxu0 0
      %768 = vmatpush1.bf16.xpose.msra.mxu0 %v757
      %769 = vmatprep.subr.bf16.mxu0 0
      %770 = vmatpush1.bf16.xpose.msra.mxu0 %v760
      %771 = vmatprep.subr.bf16.mxu0 0
      %772 = vmatpush1.bf16.xpose.msra.mxu0 %v763
      %773 = vmatprep.subr.bf16.mxu0 0
      %774 = vmatpush1.bf16.xpose.msra.mxu0 0
      %775 = vmatprep.subr.bf16.mxu0 0
      %776 = vmatpush1.bf16.xpose.msra.mxu0 0
      %777 = vmatprep.subr.bf16.mxu0 0
      %778 = vmatpush1.bf16.xpose.msra.mxu0 0
      %779 = vmatprep.subr.bf16.mxu0 0
      %780 = vmatpush1.bf16.xpose.msra.mxu0 0
      %781 = vmatprep.subr.bf16.mxu0 0
      %782 = vmatpush1.bf16.xpose.msra.mxu0 0
      %783 = vmatprep.subr.bf16.mxu0 0
      %784 = vmatpush1.bf16.xpose.msra.mxu0 0
      %785 = vmatprep.subr.bf16.mxu0 0
      %786 = vmatpush1.bf16.xpose.msra.mxu0 0
      %787 = vmatprep.subr.bf16.mxu0 0
      %788 = vmatpush1.bf16.xpose.msra.mxu0 0
      %789 = vmatprep.subr.bf16.mxu0 0
      %790 = vmatpush1.bf16.xpose.msra.mxu0 0
      %791 = vmatprep.subr.bf16.mxu0 0
      %792 = vmatpush1.bf16.xpose.msra.mxu0 0
      %793 = vmatprep.subr.bf16.mxu0 0
      %794 = vmatpush1.bf16.xpose.msra.mxu0 0
      %795 = vmatprep.subr.bf16.mxu0 0
      %796 = vmatpush1.bf16.xpose.msra.mxu0 0
      %797 = vmatprep.mubr.bf16.mxu0 0
      %798 = vmatmul.mubr.bf16.gmra.mrb[0].mxu0 %v742
      %v799 = vpop.f32.mrb[0].mxu0
      %v800 = vadd.f32 0.0, %v799
      %v801 = vpop.f32.mrb[0].mxu0
      %v802 = vpop.f32.mrb[0].mxu0
      %v803 = vadd.f32 0.0, %v802
      %v804 = vpop.f32.mrb[0].mxu0
      %805 = vmatprep.mubr.bf16.mxu0 0
      %806 = vmatmul.mubr.bf16.gmra.mrb[0].mxu0 %v745
      %v807 = vpop.f32.mrb[0].mxu0
      %v808 = vadd.f32 0.0, %v807
      %v809 = vpop.f32.mrb[0].mxu0
      %v810 = vpop.f32.mrb[0].mxu0
      %v811 = vadd.f32 0.0, %v810
      %v812 = vpop.f32.mrb[0].mxu0
      %813 = vmatprep.mubr.bf16.mxu0 0
      %814 = vmatmul.mubr.bf16.gmra.mrb[0].mxu0 %v748
      %v815 = vpop.f32.mrb[0].mxu0
      %v816 = vadd.f32 0.0, %v815
      %v817 = vpop.f32.mrb[0].mxu0
      %v818 = vpop.f32.mrb[0].mxu0
      %v819 = vadd.f32 0.0, %v818
      %v820 = vpop.f32.mrb[0].mxu0
      %821 = vmatprep.mubr.bf16.mxu0 0
      %822 = vmatmul.mubr.bf16.gmra.mrb[0].mxu0 %v751
      %v823 = vpop.f32.mrb[0].mxu0
      %v824 = vadd.f32 0.0, %v823
      %v825 = vpop.f32.mrb[0].mxu0
      %v826 = vpop.f32.mrb[0].mxu0
      %v827 = vadd.f32 0.0, %v826
      %v828 = vpop.f32.mrb[0].mxu0
      %829 = vdwg.mxu0
      %vm830 = vcmask 523264
      %v831 = vsel %vm830, %v800, -inf
      %832 = vmax.xlane.f32.xlu0 %v831
      %v833 = vpop.xlane.xlu0 %832
      %v834 = vsel %vm830, %v803, -inf
      %835 = vmax.xlane.f32.xlu0 %v834
      %v836 = vpop.xlane.xlu0 %835
      %v837 = vsel %vm830, %v808, -inf
      %838 = vmax.xlane.f32.xlu0 %v837
      %v839 = vpop.xlane.xlu0 %838
      %v840 = vsel %vm830, %v811, -inf
      %841 = vmax.xlane.f32.xlu0 %v840
      %v842 = vpop.xlane.xlu0 %841
      %v843 = vsel %vm830, %v816, -inf
      %844 = vmax.xlane.f32.xlu0 %v843
      %v845 = vpop.xlane.xlu0 %844
      %v846 = vsel %vm830, %v819, -inf
      %847 = vmax.xlane.f32.xlu0 %v846
      %v848 = vpop.xlane.xlu0 %847
      %v849 = vsel %vm830, %v824, -inf
      %850 = vmax.xlane.f32.xlu0 %v849
      %v851 = vpop.xlane.xlu0 %850
      %v852 = vsel %vm830, %v827, -inf
      %853 = vmax.xlane.f32.xlu0 %v852
      %v854 = vpop.xlane.xlu0 %853
      %v855 = vsub.f32 %v800, %v833
      %v856 = vsub.f32 %v803, %v836
      %v857 = vsub.f32 %v808, %v839
      %v858 = vsub.f32 %v811, %v842
      %v859 = vsub.f32 %v816, %v845
      %v860 = vsub.f32 %v819, %v848
      %v861 = vsub.f32 %v824, %v851
      %v862 = vsub.f32 %v827, %v854
      %v863 = vmul.f32 %v855, 1.442695
      %v864 = vpow.pop %v863
      %v865 = vmul.f32 %v856, 1.442695
      %v866 = vpow.pop %v865
      %v867 = vmul.f32 %v857, 1.442695
      %v868 = vpow.pop %v867
      %v869 = vmul.f32 %v858, 1.442695
      %v870 = vpow.pop %v869
      %v871 = vmul.f32 %v859, 1.442695
      %v872 = vpow.pop %v871
      %v873 = vmul.f32 %v860, 1.442695
      %v874 = vpow.pop %v873
      %v875 = vmul.f32 %v861, 1.442695
      %v876 = vpow.pop %v875
      %v877 = vmul.f32 %v862, 1.442695
      %v878 = vpow.pop %v877
      %v879 = vsel %vm830, %v864, 0.0
      %880 = vadd.xlane.f32.xlu0 %v879
      %v881 = vpop.xlane.xlu0 %880
      %v882 = vsel %vm830, %v866, 0.0
      %883 = vadd.xlane.f32.xlu0 %v882
      %v884 = vpop.xlane.xlu0 %883
      %v885 = vsel %vm830, %v868, 0.0
      %886 = vadd.xlane.f32.xlu0 %v885
      %v887 = vpop.xlane.xlu0 %886
      %v888 = vsel %vm830, %v870, 0.0
      %889 = vadd.xlane.f32.xlu0 %v888
      %v890 = vpop.xlane.xlu0 %889
      %v891 = vsel %vm830, %v872, 0.0
      %892 = vadd.xlane.f32.xlu0 %v891
      %v893 = vpop.xlane.xlu0 %892
      %v894 = vsel %vm830, %v874, 0.0
      %895 = vadd.xlane.f32.xlu0 %v894
      %v896 = vpop.xlane.xlu0 %895
      %v897 = vsel %vm830, %v876, 0.0
      %898 = vadd.xlane.f32.xlu0 %v897
      %v899 = vpop.xlane.xlu0 %898
      %v900 = vsel %vm830, %v878, 0.0
      %901 = vadd.xlane.f32.xlu0 %v900
      %v902 = vpop.xlane.xlu0 %901
      %v903 = vld [vmem:[%s7] sm:$0x3]
      %v904 = vld [vmem:[%s8] sm:$0x1]
      %v906 = vlaneseq
      %v907 = vshrl.u32 %v906, 7
      %v908 = vsub.s32 0, %v907
      %v909 = vrot.slane %v904, %v908
      %v912 = vsel %vm587, %v903, 0
      %914 = vmatprep.subr.bf16.mxu0 0
      %915 = vmatpush1.bf16.msra.mxu0 %v912
      %916 = vmatprep.subr.bf16.mxu0 0
      %917 = vmatpush1.bf16.msra.mxu0 0
      %918 = vmatprep.subr.bf16.mxu0 0
      %919 = vmatpush1.bf16.msra.mxu0 0
      %920 = vmatprep.subr.bf16.mxu0 0
      %921 = vmatpush1.bf16.msra.mxu0 0
      %922 = vmatprep.subr.bf16.mxu0 0
      %923 = vmatpush1.bf16.msra.mxu0 0
      %924 = vmatprep.subr.bf16.mxu0 0
      %925 = vmatpush1.bf16.msra.mxu0 0
      %926 = vmatprep.subr.bf16.mxu0 0
      %927 = vmatpush1.bf16.msra.mxu0 0
      %928 = vmatprep.subr.bf16.mxu0 0
      %929 = vmatpush1.bf16.msra.mxu0 0
      %930 = vmatprep.subr.bf16.mxu0 0
      %931 = vmatpush1.bf16.msra.mxu0 0
      %932 = vmatprep.subr.bf16.mxu0 0
      %933 = vmatpush1.bf16.msra.mxu0 0
      %934 = vmatprep.subr.bf16.mxu0 0
      %935 = vmatpush1.bf16.msra.mxu0 0
      %936 = vmatprep.subr.bf16.mxu0 0
      %937 = vmatpush1.bf16.msra.mxu0 0
      %938 = vmatprep.subr.bf16.mxu0 0
      %939 = vmatpush1.bf16.msra.mxu0 0
      %940 = vmatprep.subr.bf16.mxu0 0
      %941 = vmatpush1.bf16.msra.mxu0 0
      %942 = vmatprep.subr.bf16.mxu0 0
      %943 = vmatpush1.bf16.msra.mxu0 0
      %944 = vmatprep.subr.bf16.mxu0 0
      %945 = vmatpush1.bf16.msra.mxu0 0
      %946 = vmatprep.mubr.bf16.mxu0 0
      %947 = vmatmul.mubr.bf16.gmra.mrb[0].mxu0 %v576
      %v948 = vpop.f32.mrb[0].mxu0
      %v949 = vadd.f32 %v909, %v948
      %v950 = vpop.f32.mrb[0].mxu0
      %v951 = vpop.f32.mrb[0].mxu0
      %v952 = vadd.f32 %v909, %v951
      %v953 = vpop.f32.mrb[0].mxu0
      %954 = vmatprep.mubr.bf16.mxu0 0
      %955 = vmatmul.mubr.bf16.gmra.mrb[0].mxu0 %v579
      %v956 = vpop.f32.mrb[0].mxu0
      %v957 = vadd.f32 %v909, %v956
      %v958 = vpop.f32.mrb[0].mxu0
      %v959 = vpop.f32.mrb[0].mxu0
      %v960 = vadd.f32 %v909, %v959
      %v961 = vpop.f32.mrb[0].mxu0
      %962 = vmatprep.mubr.bf16.mxu0 0
      %963 = vmatmul.mubr.bf16.gmra.mrb[0].mxu0 %v582
      %v964 = vpop.f32.mrb[0].mxu0
      %v965 = vadd.f32 %v909, %v964
      %v966 = vpop.f32.mrb[0].mxu0
      %v967 = vpop.f32.mrb[0].mxu0
      %v968 = vadd.f32 %v909, %v967
      %v969 = vpop.f32.mrb[0].mxu0
      %970 = vmatprep.mubr.bf16.mxu0 0
      %971 = vmatmul.mubr.bf16.gmra.mrb[0].mxu0 %v585
      %v972 = vpop.f32.mrb[0].mxu0
      %v973 = vadd.f32 %v909, %v972
      %v974 = vpop.f32.mrb[0].mxu0
      %v975 = vpop.f32.mrb[0].mxu0
      %v976 = vadd.f32 %v909, %v975
      %v977 = vpop.f32.mrb[0].mxu0
      %978 = vdwg.mxu0
      %v979 = vpack.c.bf16 %v952, %v949
      %v980 = vpack.c.bf16 %v960, %v957
      %v981 = vpack.c.bf16 %v968, %v965
      %v982 = vpack.c.bf16 %v976, %v973
      %v983 = vpack.c.bf16 %v866, %v864
      %v984 = vpack.c.bf16 %v870, %v868
      %v985 = vpack.c.bf16 %v874, %v872
      %v986 = vpack.c.bf16 %v878, %v876
      %v988 = vsel %vm830, %v983, 0
      %v991 = vsel %vm830, %v984, 0
      %v994 = vsel %vm830, %v985, 0
      %v997 = vsel %vm830, %v986, 0
      %999 = vmatprep.subr.bf16.mxu0 0
      %1000 = vmatpush1.bf16.msra.mxu0 %v979
      %1001 = vmatprep.subr.bf16.mxu0 0
      %1002 = vmatpush1.bf16.msra.mxu0 %v980
      %1003 = vmatprep.subr.bf16.mxu0 0
      %1004 = vmatpush1.bf16.msra.mxu0 %v981
      %1005 = vmatprep.subr.bf16.mxu0 0
      %1006 = vmatpush1.bf16.msra.mxu0 %v982
      %1007 = vmatprep.subr.bf16.mxu0 0
      %1008 = vmatpush1.bf16.msra.mxu0 0
      %1009 = vmatprep.subr.bf16.mxu0 0
      %1010 = vmatpush1.bf16.msra.mxu0 0
      %1011 = vmatprep.subr.bf16.mxu0 0
      %1012 = vmatpush1.bf16.msra.mxu0 0
      %1013 = vmatprep.subr.bf16.mxu0 0
      %1014 = vmatpush1.bf16.msra.mxu0 0
      %1015 = vmatprep.subr.bf16.mxu0 0
      %1016 = vmatpush1.bf16.msra.mxu0 0
      %1017 = vmatprep.subr.bf16.mxu0 0
      %1018 = vmatpush1.bf16.msra.mxu0 0
      %1019 = vmatprep.subr.bf16.mxu0 0
      %1020 = vmatpush1.bf16.msra.mxu0 0
      %1021 = vmatprep.subr.bf16.mxu0 0
      %1022 = vmatpush1.bf16.msra.mxu0 0
      %1023 = vmatprep.subr.bf16.mxu0 0
      %1024 = vmatpush1.bf16.msra.mxu0 0
      %1025 = vmatprep.subr.bf16.mxu0 0
      %1026 = vmatpush1.bf16.msra.mxu0 0
      %1027 = vmatprep.subr.bf16.mxu0 0
      %1028 = vmatpush1.bf16.msra.mxu0 0
      %1029 = vmatprep.subr.bf16.mxu0 0
      %1030 = vmatpush1.bf16.msra.mxu0 0
      %1031 = vmatprep.mubr.bf16.mxu0 0
      %1032 = vmatmul.mubr.bf16.gmra.mrb[0].mxu0 %v988
      %v1033 = vpop.f32.mrb[0].mxu0
      %v1034 = vadd.f32 0.0, %v1033
      %v1035 = vpop.f32.mrb[0].mxu0
      %v1036 = vpop.f32.mrb[0].mxu0
      %v1037 = vadd.f32 0.0, %v1036
      %v1038 = vpop.f32.mrb[0].mxu0
      %1039 = vmatprep.mubr.bf16.mxu0 0
      %1040 = vmatmul.mubr.bf16.gmra.mrb[0].mxu0 %v991
      %v1041 = vpop.f32.mrb[0].mxu0
      %v1042 = vadd.f32 0.0, %v1041
      %v1043 = vpop.f32.mrb[0].mxu0
      %v1044 = vpop.f32.mrb[0].mxu0
      %v1045 = vadd.f32 0.0, %v1044
      %v1046 = vpop.f32.mrb[0].mxu0
      %1047 = vmatprep.mubr.bf16.mxu0 0
      %1048 = vmatmul.mubr.bf16.gmra.mrb[0].mxu0 %v994
      %v1049 = vpop.f32.mrb[0].mxu0
      %v1050 = vadd.f32 0.0, %v1049
      %v1051 = vpop.f32.mrb[0].mxu0
      %v1052 = vpop.f32.mrb[0].mxu0
      %v1053 = vadd.f32 0.0, %v1052
      %v1054 = vpop.f32.mrb[0].mxu0
      %1055 = vmatprep.mubr.bf16.mxu0 0
      %1056 = vmatmul.mubr.bf16.gmra.mrb[0].mxu0 %v997
      %v1057 = vpop.f32.mrb[0].mxu0
      %v1058 = vadd.f32 0.0, %v1057
      %v1059 = vpop.f32.mrb[0].mxu0
      %v1060 = vpop.f32.mrb[0].mxu0
      %v1061 = vadd.f32 0.0, %v1060
      %v1062 = vpop.f32.mrb[0].mxu0
      %1063 = vdwg.mxu0
      %v1064 = vrcp.pop %v881
      %v1065 = vrcp.pop %v884
      %v1066 = vrcp.pop %v887
      %v1067 = vrcp.pop %v890
      %v1068 = vrcp.pop %v893
      %v1069 = vrcp.pop %v896
      %v1070 = vrcp.pop %v899
      %v1071 = vrcp.pop %v902
      %v1072 = vmul.f32 %v1034, %v1064
      %v1073 = vmul.f32 %v1037, %v1065
      %v1074 = vmul.f32 %v1042, %v1066
      %v1075 = vmul.f32 %v1045, %v1067
      %v1076 = vmul.f32 %v1050, %v1068
      %v1077 = vmul.f32 %v1053, %v1069
      %v1078 = vmul.f32 %v1058, %v1070
      %v1079 = vmul.f32 %v1061, %v1071
      %v1080 = vpack.c.bf16 %v1073, %v1072
      %v1081 = vpack.c.bf16 %v1075, %v1074
      %v1082 = vpack.c.bf16 %v1077, %v1076
      %v1083 = vpack.c.bf16 %v1079, %v1078
      %v1084 = vld [vmem:[%s9] sm:$0x3]
      %v1085 = vld [vmem:[%s10] sm:$0x1]
      %v1087 = vlaneseq
      %v1088 = vshrl.u32 %v1087, 7
      %v1089 = vsub.s32 0, %v1088
      %v1090 = vrot.slane %v1085, %v1089
      %v1093 = vsel %vm574, %v1080, 0
      %v1096 = vsel %vm574, %v1081, 0
      %v1099 = vsel %vm574, %v1082, 0
      %v1102 = vsel %vm574, %v1083, 0
      %v1105 = vsel %vm587, %v1084, 0
      %1107 = vmatprep.subr.bf16.mxu0 0
      %1108 = vmatpush1.bf16.msra.mxu0 %v1105
      %1109 = vmatprep.subr.bf16.mxu0 0
      %1110 = vmatpush1.bf16.msra.mxu0 0
      %1111 = vmatprep.subr.bf16.mxu0 0
      %1112 = vmatpush1.bf16.msra.mxu0 0
      %1113 = vmatprep.subr.bf16.mxu0 0
      %1114 = vmatpush1.bf16.msra.mxu0 0
      %1115 = vmatprep.subr.bf16.mxu0 0
      %1116 = vmatpush1.bf16.msra.mxu0 0
      %1117 = vmatprep.subr.bf16.mxu0 0
      %1118 = vmatpush1.bf16.msra.mxu0 0
      %1119 = vmatprep.subr.bf16.mxu0 0
      %1120 = vmatpush1.bf16.msra.mxu0 0
      %1121 = vmatprep.subr.bf16.mxu0 0
      %1122 = vmatpush1.bf16.msra.mxu0 0
      %1123 = vmatprep.subr.bf16.mxu0 0
      %1124 = vmatpush1.bf16.msra.mxu0 0
      %1125 = vmatprep.subr.bf16.mxu0 0
      %1126 = vmatpush1.bf16.msra.mxu0 0
      %1127 = vmatprep.subr.bf16.mxu0 0
      %1128 = vmatpush1.bf16.msra.mxu0 0
      %1129 = vmatprep.subr.bf16.mxu0 0
      %1130 = vmatpush1.bf16.msra.mxu0 0
      %1131 = vmatprep.subr.bf16.mxu0 0
      %1132 = vmatpush1.bf16.msra.mxu0 0
      %1133 = vmatprep.subr.bf16.mxu0 0
      %1134 = vmatpush1.bf16.msra.mxu0 0
      %1135 = vmatprep.subr.bf16.mxu0 0
      %1136 = vmatpush1.bf16.msra.mxu0 0
      %1137 = vmatprep.subr.bf16.mxu0 0
      %1138 = vmatpush1.bf16.msra.mxu0 0
      %1139 = vmatprep.mubr.bf16.mxu0 0
      %1140 = vmatmul.mubr.bf16.gmra.mrb[0].mxu0 %v1093
      %v1141 = vpop.f32.mrb[0].mxu0
      %v1142 = vadd.f32 %v1090, %v1141
      %v1143 = vpop.f32.mrb[0].mxu0
      %v1144 = vpop.f32.mrb[0].mxu0
      %v1145 = vadd.f32 %v1090, %v1144
      %v1146 = vpop.f32.mrb[0].mxu0
      %1147 = vmatprep.mubr.bf16.mxu0 0
      %1148 = vmatmul.mubr.bf16.gmra.mrb[0].mxu0 %v1096
      %v1149 = vpop.f32.mrb[0].mxu0
      %v1150 = vadd.f32 %v1090, %v1149
      %v1151 = vpop.f32.mrb[0].mxu0
      %v1152 = vpop.f32.mrb[0].mxu0
      %v1153 = vadd.f32 %v1090, %v1152
      %v1154 = vpop.f32.mrb[0].mxu0
      %1155 = vmatprep.mubr.bf16.mxu0 0
      %1156 = vmatmul.mubr.bf16.gmra.mrb[0].mxu0 %v1099
      %v1157 = vpop.f32.mrb[0].mxu0
      %v1158 = vadd.f32 %v1090, %v1157
      %v1159 = vpop.f32.mrb[0].mxu0
      %v1160 = vpop.f32.mrb[0].mxu0
      %v1161 = vadd.f32 %v1090, %v1160
      %v1162 = vpop.f32.mrb[0].mxu0
      %1163 = vmatprep.mubr.bf16.mxu0 0
      %1164 = vmatmul.mubr.bf16.gmra.mrb[0].mxu0 %v1102
      %v1165 = vpop.f32.mrb[0].mxu0
      %v1166 = vadd.f32 %v1090, %v1165
      %v1167 = vpop.f32.mrb[0].mxu0
      %v1168 = vpop.f32.mrb[0].mxu0
      %v1169 = vadd.f32 %v1090, %v1168
      %v1170 = vpop.f32.mrb[0].mxu0
      %1171 = vdwg.mxu0
      %v1172 = vxor.u32 %v1142, 2147483648
      %v1173 = vxor.u32 %v1145, 2147483648
      %v1174 = vxor.u32 %v1150, 2147483648
      %v1175 = vxor.u32 %v1153, 2147483648
      %v1176 = vxor.u32 %v1158, 2147483648
      %v1177 = vxor.u32 %v1161, 2147483648
      %v1178 = vxor.u32 %v1166, 2147483648
      %v1179 = vxor.u32 %v1169, 2147483648
      %v1180 = vmul.f32 %v1172, 1.442695
      %v1181 = vpow.pop %v1180
      %v1182 = vmul.f32 %v1173, 1.442695
      %v1183 = vpow.pop %v1182
      %v1184 = vmul.f32 %v1174, 1.442695
      %v1185 = vpow.pop %v1184
      %v1186 = vmul.f32 %v1175, 1.442695
      %v1187 = vpow.pop %v1186
      %v1188 = vmul.f32 %v1176, 1.442695
      %v1189 = vpow.pop %v1188
      %v1190 = vmul.f32 %v1177, 1.442695
      %v1191 = vpow.pop %v1190
      %v1192 = vmul.f32 %v1178, 1.442695
      %v1193 = vpow.pop %v1192
      %v1194 = vmul.f32 %v1179, 1.442695
      %v1195 = vpow.pop %v1194
      %v1196 = vadd.f32 %v1181, 1.0
      %v1197 = vadd.f32 %v1183, 1.0
      %v1198 = vadd.f32 %v1185, 1.0
      %v1199 = vadd.f32 %v1187, 1.0
      %v1200 = vadd.f32 %v1189, 1.0
      %v1201 = vadd.f32 %v1191, 1.0
      %v1202 = vadd.f32 %v1193, 1.0
      %v1203 = vadd.f32 %v1195, 1.0
      %v1204 = vrcp.pop %v1196
      %v1205 = vmul.f32 1.0, %v1204
      %v1206 = vrcp.pop %v1197
      %v1207 = vmul.f32 1.0, %v1206
      %v1208 = vrcp.pop %v1198
      %v1209 = vmul.f32 1.0, %v1208
      %v1210 = vrcp.pop %v1199
      %v1211 = vmul.f32 1.0, %v1210
      %v1212 = vrcp.pop %v1200
      %v1213 = vmul.f32 1.0, %v1212
      %v1214 = vrcp.pop %v1201
      %v1215 = vmul.f32 1.0, %v1214
      %v1216 = vrcp.pop %v1202
      %v1217 = vmul.f32 1.0, %v1216
      %v1218 = vrcp.pop %v1203
      %v1219 = vmul.f32 1.0, %v1218
      %v1220 = vmul.f32 %v1142, %v1205
      %v1221 = vmul.f32 %v1145, %v1207
      %v1222 = vmul.f32 %v1150, %v1209
      %v1223 = vmul.f32 %v1153, %v1211
      %v1224 = vmul.f32 %v1158, %v1213
      %v1225 = vmul.f32 %v1161, %v1215
      %v1226 = vmul.f32 %v1166, %v1217
      %v1227 = vmul.f32 %v1169, %v1219
      %v1228 = vunpack.c.l.bf16 %v388
      %v1229 = vunpack.c.l.bf16 %v389
      %v1230 = vunpack.c.l.bf16 %v390
      %v1231 = vunpack.c.l.bf16 %v391
      %v1232 = vunpack.c.l.bf16 %v392
      %v1233 = vunpack.c.l.bf16 %v393
      %v1234 = vunpack.c.l.bf16 %v394
      %v1235 = vunpack.c.l.bf16 %v395
      %v1236 = vadd.f32 %v1220, %v1228
      %v1237 = vadd.f32 %v1221, %v1229
      %v1238 = vadd.f32 %v1222, %v1230
      %v1239 = vadd.f32 %v1223, %v1231
      %v1240 = vadd.f32 %v1224, %v1232
      %v1241 = vadd.f32 %v1225, %v1233
      %v1242 = vadd.f32 %v1226, %v1234
      %v1243 = vadd.f32 %v1227, %v1235
      %v1244 = vpack.c.bf16 %v1237, %v1236
      %v1245 = vpack.c.bf16 %v1239, %v1238
      %v1246 = vpack.c.bf16 %v1241, %v1240
      %v1247 = vpack.c.bf16 %v1243, %v1242
      %v1252 = vunpack.c.l.b16 %v1244
      %v1253 = vunpack.c.h.b16 %v1244
      %v1254 = vunpack.c.l.b16 %v1245
      %v1255 = vunpack.c.h.b16 %v1245
      %v1256 = vunpack.c.l.b16 %v1246
      %v1257 = vunpack.c.h.b16 %v1246
      %v1258 = vunpack.c.l.b16 %v1247
      %v1259 = vunpack.c.h.b16 %v1247
      %v1260 = vpack.c.b16 %v1252, %v1252
      %v1261 = vpack.c.b16 %v1253, %v1253
      %v1262 = vpack.c.b16 %v1254, %v1254
      %v1263 = vpack.c.b16 %v1255, %v1255
      %v1264 = vpack.c.b16 %v1256, %v1256
      %v1265 = vpack.c.b16 %v1257, %v1257
      %v1266 = vpack.c.b16 %v1258, %v1258
      %v1267 = vpack.c.b16 %v1259, %v1259
      %vm1276 = vcmask 60416
      %1277 = vst.msk [vmem:[%s386] sm:$0xf] %vm1276, %v1260
      %1278 = vst.msk [vmem:[%s386 + $0x4] sm:$0xf] %vm1276, %v1261
      %1279 = vst.msk [vmem:[%s386 + $0x8] sm:$0xf] %vm1276, %v1262
      %1280 = vst.msk [vmem:[%s386 + $0xc] sm:$0xf] %vm1276, %v1263
      %1281 = vst.msk [vmem:[%s386 + $0x10] sm:$0xf] %vm1276, %v1264
      %1282 = vst.msk [vmem:[%s386 + $0x14] sm:$0xf] %vm1276, %v1265
      %1283 = vst.msk [vmem:[%s386 + $0x18] sm:$0xf] %vm1276, %v1266
      %1284 = vst.msk [vmem:[%s386 + $0x1c] sm:$0xf] %vm1276, %v1267
      %p1285 = scmp.lt.s32.totalorder %s22, 1
      %s1286 = scalar_select %p1285, %s22, 1
      %s1287 = smul.addr %s1286, 8
      %s1288 = smul.addr %s1287, 4
      %s1289 = scalar_lea.vmem %s11, %s1288
      // Predicated region
      $region65: #{_lambda_.4} parent=63 // pred_check
        %p1290 = pneg %p276
      $region66: #{_lambda_.4} parent=63 // pred_check_branch
        %1292 = sbr.rel (%p1290) target = $region68
      $region67: #{_lambda_.4} parent=63 // pred_region
        _
      $region68: #{_lambda_.4} parent=63 // pred_fallthru
        _
    $region64: #{_lambda_.4} parent=5 // pred_fallthru
      _
    %p1293 = scmp.le.s32.totalorder 2, %s17
    // Predicated region
    $region69: #{_lambda_.4} parent=5 // pred_check
      %p1294 = pneg %p1293
    $region70: #{_lambda_.4} parent=5 // pred_check_branch
      %1296 = sbr.rel (%p1294) target = $region72
    $region71: #{_lambda_.4} parent=5 // pred_region
      %s1297 = ssub.s32 %s17, 2
      // Predicated region
      $region73: #{_lambda_.4} parent=71 // pred_check
        %p1298 = pneg %p282
      $region74: #{_lambda_.4} parent=71 // pred_check_branch
        %1300 = sbr.rel (%p1298) target = $region76
      $region75: #{_lambda_.4} parent=71 // pred_region
        %p1301 = scmp.lt.s32.totalorder %s23, 1
        %s1302 = scalar_select %p1301, %s23, 1
        %s1303 = smul.addr %s1302, 8
        %s1304 = smul.addr %s1303, 4
        %s1305 = scalar_lea.vmem %s11, %s1304
      $region76: #{_lambda_.4} parent=71 // pred_fallthru
        _
    $region72: #{_lambda_.4} parent=5 // pred_fallthru
      _
  $region6: #{_lambda_.4} parent=0 // loop_footer
    %s21 = sadd.s32 1, %s17
  $region7: #{_lambda_.4} parent=0 // loop_footer_branch
    %16 = sbr.rel target = $region3
  $region8: #{_lambda_.4} parent=0 // loop_exit
    _

</llo_original>
